<compile_context>
chip_gen: v6e
topology: v6e:2x2x1
jax: 0.10.0
libtpu: 0.0.40
codegen_flags: <defaults>
</compile_context>

<pallas_src>
import jax
import jax.numpy as jnp
from jax import lax
from jax.experimental import pallas as pl
from jax.experimental.pallas import tpu as pltpu

B, N, D, C = 2, 8, 32, 4          # batch, words per sentence, hidden, classes
BN = B * N                        # folded batch*words rows per graph
LOG2N = (N - 1).bit_length()
assert (1 << LOG2N) == N


# ----------------------------------------------------------------------------
# Fused kernel: pre-GNN -> interact (biaffine + masked softmax + proj)
#               -> post-GNN -> word_loc gather + LayerNorm + output Linear
# ----------------------------------------------------------------------------
def _fused_forward_kernel(
    x_ref,      # (2BN, D)   f32   [x1 rows (b-major) ; x2 rows (b-major)]
    m_ref,      # (2, BN, 1) f32   [mask1 flattened ; mask2 flattened]
    pool_ref,   # (B, D)     f32   LM pooler output
    a_ref,      # (2BN, 2BN) bf16  block-diag GCN-normalized adjacency
    loc_ref,    # (2B,) int32 SMEM absolute row index into g_all per gather
    w_ref,      # (9D, D) bf16  [pre_w1; pre_w2; post_w1; post_w2; bil_w00; proj_w(4D)]
    v_ref,      # (8, D)  f32   [pre_b1; pre_b2; post_b1; post_b2; w01; w10; proj_b; [wsc,0..]]
    ln_ref,     # (2, 3D) f32   [gamma; beta]
    ow_ref,     # (3D+1, C) f32 [out_w; out_b]
    o_ref,      # (B, C)  f32
):
    bf16 = jnp.bfloat16
    a_bf = a_ref[...]                                    # (2BN, 2BN) bf16

    def gnn2(x_bf, w1, b1, w2, b2):
        # GCNConv x2: relu(A (X W1) + b1) -> relu(A (. W2) + b2)  (dropout = id)
        h = jnp.dot(x_bf, w1, preferred_element_type=jnp.float32)
        h = jnp.dot(a_bf, h.astype(bf16), preferred_element_type=jnp.float32) + b1
        h = jnp.maximum(h, 0.0)
        g = jnp.dot(h.astype(bf16), w2, preferred_element_type=jnp.float32)
        g = jnp.dot(a_bf, g.astype(bf16), preferred_element_type=jnp.float32) + b2
        return jnp.maximum(g, 0.0)                       # f32

    # ---- pre_interact_gnn on both graphs & whole batch at once (2BN rows) ----
    h_all = gnn2(x_ref[...].astype(bf16),
                 w_ref[0:D, :], v_ref[0:1, :],
                 w_ref[D:2 * D, :], v_ref[1:2, :])       # (2BN, D) f32

    # ---- InteractGraphsNet (batched over all B examples at once) ------------
    h1 = h_all[:BN, :]                                   # (BN, D) f32
    h2 = h_all[BN:, :]
    h1_bf = h1.astype(bf16)
    h2_bf = h2.astype(bf16)

    w00 = w_ref[4 * D:5 * D, :]                          # (D, D) bf16
    w01 = v_ref[4:5, :]                                  # (1, D) f32
    w10 = v_ref[5:6, :]                                  # (1, D) f32
    wsc = v_ref[7:8, 0:1]                                # (1, 1) f32 (w11 + bias)

    # BilinearMatrixAttention(use_input_biases=True):
    #   [h1;1] W [h2;1]^T + bias — w10 row folds into the bilinear LHS,
    #   w01 column is a VPU multiply + lane reduce, wsc is scalar.
    h1w = jnp.dot(h1_bf, w00, preferred_element_type=jnp.float32) + w10
    attn = lax.dot_general(h1w.astype(bf16), h2_bf, (((1,), (1,)), ((), ())),
                           preferred_element_type=jnp.float32)   # (BN, BN)
    attn = attn + jnp.sum(h1 * w01, axis=-1, keepdims=True) + wsc

    # Block-diagonal mask makes one 16-row masked softmax exactly equal to the
    # per-example 8-row masked softmax (off-block entries are masked to zero).
    ri = lax.broadcasted_iota(jnp.int32, (BN, BN), 0)
    ci = lax.broadcasted_iota(jnp.int32, (BN, BN), 1)
    blk = (jnp.right_shift(ri, LOG2N) == jnp.right_shift(ci, LOG2N)
           ).astype(jnp.float32)                         # (BN, BN)
    mask1 = blk * m_ref[0]                               # rows masked by sent-1 mask
    mask2 = blk * m_ref[1]                               # rows masked by sent-2 mask

    def masked_softmax_rows(a, m):
        # AllenNLP masked_softmax over dim=1 (rows); exact divisions.
        z = a * m
        z = z - jnp.max(z, axis=0, keepdims=True)
        e = jnp.exp(z)
        s = (e / jnp.sum(e, axis=0, keepdims=True)) * m
        return s / (jnp.sum(s, axis=0, keepdims=True) + 1e-13)

    n1 = masked_softmax_rows(attn, mask1)                # (BN, BN) f32
    n2 = masked_softmax_rows(attn, mask2)

    att1 = lax.dot_general(n1.astype(bf16), h1_bf, (((0,), (0,)), ((), ())),
                           preferred_element_type=jnp.float32)    # attended_1 (BN, D)
    att2 = jnp.dot(n2.astype(bf16), h2_bf,
                   preferred_element_type=jnp.float32)            # attended_2 (BN, D)

    # attn_proj for both "new_h1" and "new_h2" in ONE (2BN, 4D)@(4D, D) push;
    # the row order directly matches the post-GNN block-diag adjacency layout.
    proj_w = w_ref[5 * D:9 * D, :]                       # (4D, D) bf16
    proj_b = v_ref[6:7, :]                               # (1, D)  f32
    top = jnp.concatenate([h1, att2, h1 - att2, h1 * att2], axis=-1)   # new_h1 inputs
    bot = jnp.concatenate([h2, att1, h2 - att1, h2 * att1], axis=-1)   # new_h2 inputs
    cat_all = jnp.concatenate([top, bot], axis=0).astype(bf16)         # (2BN, 4D)
    newh = jnp.maximum(
        jnp.dot(cat_all, proj_w, preferred_element_type=jnp.float32) + proj_b,
        0.0)                                             # (2BN, D) f32

    # ---- post_interact_gnn (shared weights, both graphs, whole batch) -------
    g_all = gnn2(newh.astype(bf16),
                 w_ref[2 * D:3 * D, :], v_ref[2:3, :],
                 w_ref[3 * D:4 * D, :], v_ref[3:4, :])   # (2BN, D) f32

    # ---- head: word_loc gather as a selection matmul, LayerNorm, Linear -----
    lane = lax.broadcasted_iota(jnp.int32, (1, 2 * BN), 1)
    sel = jnp.concatenate(
        [(lane == loc_ref[r]).astype(jnp.float32) for r in range(2 * B)],
        axis=0)                                          # (2B, 2BN) one-hot rows
    word = jnp.dot(sel, g_all, preferred_element_type=jnp.float32)   # (2B, D)

    cat = jnp.concatenate([pool_ref[...], word[:B, :], word[B:, :]], axis=-1)  # (B, 3D)
    mu = jnp.mean(cat, axis=-1, keepdims=True)
    var = jnp.mean((cat - mu) ** 2, axis=-1, keepdims=True)
    y = (cat - mu) * lax.rsqrt(var + 1e-5) * ln_ref[0:1, :] + ln_ref[1:2, :]
    o_ref[...] = (jnp.dot(y, ow_ref[0:3 * D, :], preferred_element_type=jnp.float32)
                  + ow_ref[3 * D:3 * D + 1, :])          # (B, C)


_VMEM = pl.BlockSpec(memory_space=pltpu.MemorySpace.VMEM)
_SMEM = pl.BlockSpec(memory_space=pltpu.MemorySpace.SMEM)


@jax.jit
def word_level_net_forward(packed, x_all, m_flat, pooler, a_all, loc_all):
    return pl.pallas_call(
        _fused_forward_kernel,
        out_shape=jax.ShapeDtypeStruct((B, C), jnp.float32),
        in_specs=[_VMEM, _VMEM, _VMEM, _VMEM, _SMEM, _VMEM, _VMEM, _VMEM, _VMEM],
        out_specs=_VMEM,
    )(x_all, m_flat, pooler, a_all, loc_all,
      packed["w_slab"], packed["v_slab"], packed["ln_slab"], packed["out_slab"])


# ----------------------------------------------------------------------------
# Host-side prep (hoisted out of the per-call path): packing + folding helpers
# ----------------------------------------------------------------------------
def pack_params(p):
    """Collapse the 19 weight/bias tensors into 4 packed slabs."""
    w_slab = jnp.concatenate(
        [p["pre_w1"], p["pre_w2"], p["post_w1"], p["post_w2"],
         p["bil_w00"], p["proj_w"]], axis=0).astype(jnp.bfloat16)          # (9D, D)
    wsc_row = jnp.concatenate(
        [p["bil_wsc"], jnp.zeros((1, D - 1), jnp.float32)], axis=1)        # (1, D)
    v_slab = jnp.concatenate(
        [p["pre_b1"], p["pre_b2"], p["post_b1"], p["post_b2"],
         p["bil_w01"], p["bil_w10"], p["proj_b"], wsc_row], axis=0)        # (8, D)
    ln_slab = jnp.concatenate([p["ln_g"], p["ln_b"]], axis=0)              # (2, 3D)
    out_slab = jnp.concatenate([p["out_w"], p["out_b"]], axis=0)           # (3D+1, C)
    return dict(w_slab=w_slab, v_slab=v_slab, ln_slab=ln_slab, out_slab=out_slab)


def prepare_inputs(x1, x2, mask1, mask2, adj1, adj2, loc1, loc2):
    """Fold batch + both graphs into activation/adjacency slabs, once per batch."""
    x_all = jnp.concatenate([x1.reshape(BN, D), x2.reshape(BN, D)], axis=0)
    m_flat = jnp.stack([mask1.reshape(BN, 1), mask2.reshape(BN, 1)], axis=0)
    a_all = jax.scipy.linalg.block_diag(
        *([adj1] * B + [adj2] * B)).astype(jnp.bfloat16)                   # (2BN, 2BN)
    arange_b = jnp.arange(B, dtype=jnp.int32)
    loc_all = jnp.concatenate(
        [arange_b * N + loc1.astype(jnp.int32),
         BN + arange_b * N + loc2.astype(jnp.int32)]).astype(jnp.int32)    # (2B,)
    return x_all, m_flat, a_all, loc_all


# ----------------------------------------------------------------------------
# Glue: dense GCN-normalized adjacency (self-loops + symmetric normalization)
# ----------------------------------------------------------------------------
def gcn_norm_adj(edge_index, edge_weight, num_nodes):
    src, dst = edge_index[0], edge_index[1]
    a = jnp.zeros((num_nodes, num_nodes), jnp.float32)
    a = a.at[dst, src].add(edge_weight.astype(jnp.float32))  # A[i,j] = w(j -> i)
    a = a + jnp.eye(num_nodes, dtype=jnp.float32)            # self loops, fill=1
    deg = jnp.sum(a, axis=1)
    dinv = jnp.where(deg > 0, lax.rsqrt(deg), 0.0)
    return a * dinv[:, None] * dinv[None, :]


# ----------------------------------------------------------------------------
# Parameters (deterministic)
# ----------------------------------------------------------------------------
def init_params(key, d, c):
    ks = jax.random.split(key, 20)
    w = lambda k, shape: (0.1 * jax.random.normal(k, shape)).astype(jnp.float32)
    return dict(
        # pre_interact_gnn (2x GCNConv): weight [D,D], bias [1,D]
        pre_w1=w(ks[0], (d, d)), pre_b1=w(ks[1], (1, d)),
        pre_w2=w(ks[2], (d, d)), pre_b2=w(ks[3], (1, d)),
        # post_interact_gnn
        post_w1=w(ks[4], (d, d)), post_b1=w(ks[5], (1, d)),
        post_w2=w(ks[6], (d, d)), post_b2=w(ks[7], (1, d)),
        # BilinearMatrixAttention (use_input_biases=True) decomposed
        bil_w00=w(ks[8], (d, d)), bil_w01=w(ks[9], (1, d)),
        bil_w10=w(ks[10], (1, d)),
        bil_wsc=(0.1 * jax.random.normal(ks[11], (1, 1))).astype(jnp.float32),
        # attn_proj: Linear(4D, D) stored pre-stacked as a single (4D, D) matrix
        proj_w=w(ks[12], (4 * d, d)),
        proj_b=w(ks[16], (1, d)),
        # LayerNorm(3D) + output Linear(3D, C)
        ln_g=jnp.ones((1, 3 * d), jnp.float32),
        ln_b=jnp.zeros((1, 3 * d), jnp.float32),
        out_w=w(ks[17], (3 * d, c)),
        out_b=jnp.zeros((1, c), jnp.float32),
    )


if __name__ == "__main__":
    key = jax.random.PRNGKey(0)
    k_par, k_x1, k_x2, k_pool, k_ew1, k_ew2 = jax.random.split(key, 6)
    params = init_params(k_par, D, C)
    packed = pack_params(params)

    # Synthetic LM outputs (stand-ins for LMNet word-mean-pooled embeddings)
    x1 = jax.random.normal(k_x1, (B, N, D), jnp.float32)
    x2 = jax.random.normal(k_x2, (B, N, D), jnp.float32)
    pooler = jax.random.normal(k_pool, (B, D), jnp.float32)
    mask1 = (jnp.arange(N)[None, :] < jnp.array([[5], [7]])).astype(jnp.float32)
    mask2 = (jnp.arange(N)[None, :] < jnp.array([[6], [4]])).astype(jnp.float32)

    # Two deterministic graphs over N nodes (shared across the batch, node_dim=1)
    chain_src = jnp.concatenate([jnp.arange(N - 1), jnp.arange(1, N)])
    chain_dst = jnp.concatenate([jnp.arange(1, N), jnp.arange(N - 1)])
    edge_index_1 = jnp.stack([chain_src, chain_dst]).astype(jnp.int32)
    star_src = jnp.concatenate([jnp.zeros(N - 1, jnp.int32), jnp.arange(1, N)])
    star_dst = jnp.concatenate([jnp.arange(1, N), jnp.zeros(N - 1, jnp.int32)])
    edge_index_2 = jnp.stack([star_src, star_dst]).astype(jnp.int32)
    edge_attr_1 = 0.5 + jax.random.uniform(k_ew1, (edge_index_1.shape[1],))
    edge_attr_2 = 0.5 + jax.random.uniform(k_ew2, (edge_index_2.shape[1],))
    adj1 = gcn_norm_adj(edge_index_1, edge_attr_1.flatten(), N)
    adj2 = gcn_norm_adj(edge_index_2, edge_attr_2.flatten(), N)

    # word_loc per example (index of the target word in each sentence)
    loc1 = jnp.array([2, 5], jnp.int32)
    loc2 = jnp.array([1, 3], jnp.int32)

    x_all, m_flat, a_all, loc_all = prepare_inputs(
        x1, x2, mask1, mask2, adj1, adj2, loc1, loc2)

    out = word_level_net_forward(packed, x_all, m_flat, pooler, a_all, loc_all)
    out = jax.block_until_ready(out)
    assert out.shape == (B, C) and bool(jnp.all(jnp.isfinite(out)))
    print("KERNEL_OK")
</pallas_src>

<mosaic_0001>
module attributes {stable_mosaic.version = 11 : i64} {
  func.func @_fused_forward_kernel(%arg0: memref<32x32xf32, #tpu.memory_space<vmem>>, %arg1: memref<2x16x1xf32, #tpu.memory_space<vmem>>, %arg2: memref<2x32xf32, #tpu.memory_space<vmem>>, %arg3: memref<32x32xbf16, #tpu.memory_space<vmem>>, %arg4: memref<4xi32, #tpu.memory_space<smem>>, %arg5: memref<288x32xbf16, #tpu.memory_space<vmem>>, %arg6: memref<8x32xf32, #tpu.memory_space<vmem>>, %arg7: memref<2x96xf32, #tpu.memory_space<vmem>>, %arg8: memref<97x4xf32, #tpu.memory_space<vmem>>, %arg9: memref<2x4xf32, #tpu.memory_space<vmem>>) attributes {dimension_semantics = [], scalar_prefetch = 0 : i64, scratch_operands = 0 : i64, tpu.core_type = #tpu.core_type<tc>} {
    %c0 = arith.constant 0 : index
    %c0_0 = arith.constant 0 : index
    %0 = vector.load %arg3[%c0, %c0_0] : memref<32x32xbf16, #tpu.memory_space<vmem>>, vector<32x32xbf16>
    %c0_1 = arith.constant 0 : index
    %c0_2 = arith.constant 0 : index
    %1 = vector.load %arg0[%c0_1, %c0_2] : memref<32x32xf32, #tpu.memory_space<vmem>>, vector<32x32xf32>
    %2 = arith.truncf %1 : vector<32x32xf32> to vector<32x32xbf16>
    %c0_3 = arith.constant 0 : index
    %c0_4 = arith.constant 0 : index
    %3 = vector.load %arg5[%c0_3, %c0_4] : memref<288x32xbf16, #tpu.memory_space<vmem>>, vector<32x32xbf16>
    %c0_5 = arith.constant 0 : index
    %c0_6 = arith.constant 0 : index
    %4 = vector.load %arg6[%c0_5, %c0_6] : memref<8x32xf32, #tpu.memory_space<vmem>>, vector<1x32xf32>
    %c32 = arith.constant 32 : index
    %c0_7 = arith.constant 0 : index
    %5 = vector.load %arg5[%c32, %c0_7] : memref<288x32xbf16, #tpu.memory_space<vmem>>, vector<32x32xbf16>
    %c1 = arith.constant 1 : index
    %c0_8 = arith.constant 0 : index
    %6 = vector.load %arg6[%c1, %c0_8] : memref<8x32xf32, #tpu.memory_space<vmem>>, vector<1x32xf32>
    %cst = arith.constant dense<0.000000e+00> : vector<32x32xf32>
    %7 = tpu.matmul %2, %3, %cst {dimension_numbers = #tpu.dot_dimension_numbers<[1], [0], [0], [1], [0, 0, 1, 1], [], []>} : vector<32x32xbf16>, vector<32x32xbf16>, vector<32x32xf32> -> vector<32x32xf32>
    %8 = arith.truncf %7 : vector<32x32xf32> to vector<32x32xbf16>
    %cst_9 = arith.constant dense<0.000000e+00> : vector<32x32xf32>
    %9 = tpu.matmul %0, %8, %cst_9 {dimension_numbers = #tpu.dot_dimension_numbers<[1], [0], [0], [1], [0, 0, 1, 1], [], []>} : vector<32x32xbf16>, vector<32x32xbf16>, vector<32x32xf32> -> vector<32x32xf32>
    %10 = vector.broadcast %4 : vector<1x32xf32> to vector<32x32xf32>
    %11 = arith.addf %9, %10 : vector<32x32xf32>
    %cst_10 = arith.constant 0.000000e+00 : f32
    %12 = vector.broadcast %cst_10 : f32 to vector<32x32xf32>
    %13 = arith.maximumf %11, %12 : vector<32x32xf32>
    %14 = arith.truncf %13 : vector<32x32xf32> to vector<32x32xbf16>
    %cst_11 = arith.constant dense<0.000000e+00> : vector<32x32xf32>
    %15 = tpu.matmul %14, %5, %cst_11 {dimension_numbers = #tpu.dot_dimension_numbers<[1], [0], [0], [1], [0, 0, 1, 1], [], []>} : vector<32x32xbf16>, vector<32x32xbf16>, vector<32x32xf32> -> vector<32x32xf32>
    %16 = arith.truncf %15 : vector<32x32xf32> to vector<32x32xbf16>
    %cst_12 = arith.constant dense<0.000000e+00> : vector<32x32xf32>
    %17 = tpu.matmul %0, %16, %cst_12 {dimension_numbers = #tpu.dot_dimension_numbers<[1], [0], [0], [1], [0, 0, 1, 1], [], []>} : vector<32x32xbf16>, vector<32x32xbf16>, vector<32x32xf32> -> vector<32x32xf32>
    %18 = vector.broadcast %6 : vector<1x32xf32> to vector<32x32xf32>
    %19 = arith.addf %17, %18 : vector<32x32xf32>
    %cst_13 = arith.constant 0.000000e+00 : f32
    %20 = vector.broadcast %cst_13 : f32 to vector<32x32xf32>
    %21 = arith.maximumf %19, %20 : vector<32x32xf32>
    %22 = vector.extract_strided_slice %21 {offsets = [0, 0], sizes = [16, 32], strides = [1, 1]} : vector<32x32xf32> to vector<16x32xf32>
    %23 = vector.extract_strided_slice %21 {offsets = [16, 0], sizes = [16, 32], strides = [1, 1]} : vector<32x32xf32> to vector<16x32xf32>
    %24 = arith.truncf %22 : vector<16x32xf32> to vector<16x32xbf16>
    %25 = arith.truncf %23 : vector<16x32xf32> to vector<16x32xbf16>
    %c128 = arith.constant 128 : index
    %c0_14 = arith.constant 0 : index
    %26 = vector.load %arg5[%c128, %c0_14] : memref<288x32xbf16, #tpu.memory_space<vmem>>, vector<32x32xbf16>
    %c4 = arith.constant 4 : index
    %c0_15 = arith.constant 0 : index
    %27 = vector.load %arg6[%c4, %c0_15] : memref<8x32xf32, #tpu.memory_space<vmem>>, vector<1x32xf32>
    %c5 = arith.constant 5 : index
    %c0_16 = arith.constant 0 : index
    %28 = vector.load %arg6[%c5, %c0_16] : memref<8x32xf32, #tpu.memory_space<vmem>>, vector<1x32xf32>
    %c7 = arith.constant 7 : index
    %c0_17 = arith.constant 0 : index
    %29 = vector.load %arg6[%c7, %c0_17] : memref<8x32xf32, #tpu.memory_space<vmem>>, vector<1x1xf32>
    %cst_18 = arith.constant dense<0.000000e+00> : vector<16x32xf32>
    %30 = tpu.matmul %24, %26, %cst_18 {dimension_numbers = #tpu.dot_dimension_numbers<[1], [0], [0], [1], [0, 0, 1, 1], [], []>} : vector<16x32xbf16>, vector<32x32xbf16>, vector<16x32xf32> -> vector<16x32xf32>
    %31 = vector.broadcast %28 : vector<1x32xf32> to vector<16x32xf32>
    %32 = arith.addf %30, %31 : vector<16x32xf32>
    %33 = arith.truncf %32 : vector<16x32xf32> to vector<16x32xbf16>
    %cst_19 = arith.constant dense<0.000000e+00> : vector<16x16xf32>
    %34 = tpu.matmul %33, %25, %cst_19 {dimension_numbers = #tpu.dot_dimension_numbers<[1], [1], [0], [0], [0, 0, 1, 0], [], []>} : vector<16x32xbf16>, vector<16x32xbf16>, vector<16x16xf32> -> vector<16x16xf32>
    %35 = vector.broadcast %27 : vector<1x32xf32> to vector<16x32xf32>
    %36 = arith.mulf %22, %35 : vector<16x32xf32>
    %cst_20 = arith.constant dense<0.000000e+00> : vector<16xf32>
    %37 = vector.multi_reduction <add>, %36, %cst_20 [1] : vector<16x32xf32> to vector<16xf32>
    %38 = vector.shape_cast %37 : vector<16xf32> to vector<16x1xf32>
    %39 = vector.broadcast %38 : vector<16x1xf32> to vector<16x16xf32>
    %40 = arith.addf %34, %39 : vector<16x16xf32>
    %41 = vector.broadcast %29 : vector<1x1xf32> to vector<16x16xf32>
    %42 = arith.addf %40, %41 : vector<16x16xf32>
    %43 = tpu.iota {dimensions = array<i32: 0>} : vector<16x16xi32>
    %44 = tpu.iota {dimensions = array<i32: 1>} : vector<16x16xi32>
    %c3_i32 = arith.constant 3 : i32
    %45 = vector.broadcast %c3_i32 : i32 to vector<16x16xi32>
    %46 = arith.shrsi %43, %45 : vector<16x16xi32>
    %c3_i32_21 = arith.constant 3 : i32
    %47 = vector.broadcast %c3_i32_21 : i32 to vector<16x16xi32>
    %48 = arith.shrsi %44, %47 : vector<16x16xi32>
    %49 = arith.cmpi eq, %46, %48 : vector<16x16xi32>
    %50 = arith.extui %49 : vector<16x16xi1> to vector<16x16xi32>
    %51 = arith.sitofp %50 : vector<16x16xi32> to vector<16x16xf32>
    %c0_22 = arith.constant 0 : index
    %c0_23 = arith.constant 0 : index
    %c0_24 = arith.constant 0 : index
    %52 = vector.load %arg1[%c0_22, %c0_23, %c0_24] : memref<2x16x1xf32, #tpu.memory_space<vmem>>, vector<1x16x1xf32>
    %53 = vector.shape_cast %52 : vector<1x16x1xf32> to vector<16x1xf32>
    %54 = vector.broadcast %53 : vector<16x1xf32> to vector<16x16xf32>
    %55 = arith.mulf %51, %54 : vector<16x16xf32>
    %c1_25 = arith.constant 1 : index
    %c0_26 = arith.constant 0 : index
    %c0_27 = arith.constant 0 : index
    %56 = vector.load %arg1[%c1_25, %c0_26, %c0_27] : memref<2x16x1xf32, #tpu.memory_space<vmem>>, vector<1x16x1xf32>
    %57 = vector.shape_cast %56 : vector<1x16x1xf32> to vector<16x1xf32>
    %58 = vector.broadcast %57 : vector<16x1xf32> to vector<16x16xf32>
    %59 = arith.mulf %51, %58 : vector<16x16xf32>
    %60 = arith.mulf %42, %55 : vector<16x16xf32>
    %cst_28 = arith.constant dense<0xFF800000> : vector<16xf32>
    %61 = vector.multi_reduction <maximumf>, %60, %cst_28 [0] : vector<16x16xf32> to vector<16xf32>
    %62 = vector.shape_cast %61 : vector<16xf32> to vector<1x16xf32>
    %63 = vector.broadcast %62 : vector<1x16xf32> to vector<16x16xf32>
    %64 = arith.subf %60, %63 : vector<16x16xf32>
    %65 = math.exp %64 : vector<16x16xf32>
    %cst_29 = arith.constant dense<0.000000e+00> : vector<16xf32>
    %66 = vector.multi_reduction <add>, %65, %cst_29 [0] : vector<16x16xf32> to vector<16xf32>
    %67 = vector.shape_cast %66 : vector<16xf32> to vector<1x16xf32>
    %68 = vector.broadcast %67 : vector<1x16xf32> to vector<16x16xf32>
    %69 = arith.divf %65, %68 : vector<16x16xf32>
    %70 = arith.mulf %69, %55 : vector<16x16xf32>
    %cst_30 = arith.constant dense<0.000000e+00> : vector<16xf32>
    %71 = vector.multi_reduction <add>, %70, %cst_30 [0] : vector<16x16xf32> to vector<16xf32>
    %72 = vector.shape_cast %71 : vector<16xf32> to vector<1x16xf32>
    %cst_31 = arith.constant 9.99999982E-14 : f32
    %73 = vector.broadcast %cst_31 : f32 to vector<1x16xf32>
    %74 = arith.addf %72, %73 : vector<1x16xf32>
    %75 = vector.broadcast %74 : vector<1x16xf32> to vector<16x16xf32>
    %76 = arith.divf %70, %75 : vector<16x16xf32>
    %77 = arith.mulf %42, %59 : vector<16x16xf32>
    %cst_32 = arith.constant dense<0xFF800000> : vector<16xf32>
    %78 = vector.multi_reduction <maximumf>, %77, %cst_32 [0] : vector<16x16xf32> to vector<16xf32>
    %79 = vector.shape_cast %78 : vector<16xf32> to vector<1x16xf32>
    %80 = vector.broadcast %79 : vector<1x16xf32> to vector<16x16xf32>
    %81 = arith.subf %77, %80 : vector<16x16xf32>
    %82 = math.exp %81 : vector<16x16xf32>
    %cst_33 = arith.constant dense<0.000000e+00> : vector<16xf32>
    %83 = vector.multi_reduction <add>, %82, %cst_33 [0] : vector<16x16xf32> to vector<16xf32>
    %84 = vector.shape_cast %83 : vector<16xf32> to vector<1x16xf32>
    %85 = vector.broadcast %84 : vector<1x16xf32> to vector<16x16xf32>
    %86 = arith.divf %82, %85 : vector<16x16xf32>
    %87 = arith.mulf %86, %59 : vector<16x16xf32>
    %cst_34 = arith.constant dense<0.000000e+00> : vector<16xf32>
    %88 = vector.multi_reduction <add>, %87, %cst_34 [0] : vector<16x16xf32> to vector<16xf32>
    %89 = vector.shape_cast %88 : vector<16xf32> to vector<1x16xf32>
    %cst_35 = arith.constant 9.99999982E-14 : f32
    %90 = vector.broadcast %cst_35 : f32 to vector<1x16xf32>
    %91 = arith.addf %89, %90 : vector<1x16xf32>
    %92 = vector.broadcast %91 : vector<1x16xf32> to vector<16x16xf32>
    %93 = arith.divf %87, %92 : vector<16x16xf32>
    %94 = arith.truncf %76 : vector<16x16xf32> to vector<16x16xbf16>
    %cst_36 = arith.constant dense<0.000000e+00> : vector<16x32xf32>
    %95 = tpu.matmul %94, %24, %cst_36 {dimension_numbers = #tpu.dot_dimension_numbers<[0], [0], [1], [1], [0, 1, 1, 1], [], []>} : vector<16x16xbf16>, vector<16x32xbf16>, vector<16x32xf32> -> vector<16x32xf32>
    %96 = arith.truncf %93 : vector<16x16xf32> to vector<16x16xbf16>
    %cst_37 = arith.constant dense<0.000000e+00> : vector<16x32xf32>
    %97 = tpu.matmul %96, %25, %cst_37 {dimension_numbers = #tpu.dot_dimension_numbers<[1], [0], [0], [1], [0, 0, 1, 1], [], []>} : vector<16x16xbf16>, vector<16x32xbf16>, vector<16x32xf32> -> vector<16x32xf32>
    %c160 = arith.constant 160 : index
    %c0_38 = arith.constant 0 : index
    %98 = vector.load %arg5[%c160, %c0_38] : memref<288x32xbf16, #tpu.memory_space<vmem>>, vector<128x32xbf16>
    %c6 = arith.constant 6 : index
    %c0_39 = arith.constant 0 : index
    %99 = vector.load %arg6[%c6, %c0_39] : memref<8x32xf32, #tpu.memory_space<vmem>>, vector<1x32xf32>
    %100 = arith.subf %22, %97 : vector<16x32xf32>
    %101 = arith.mulf %22, %97 : vector<16x32xf32>
    %102 = tpu.concatenate %22, %97, %100, %101 in 1 : vector<16x32xf32>, vector<16x32xf32>, vector<16x32xf32>, vector<16x32xf32> -> vector<16x128xf32>
    %103 = arith.subf %23, %95 : vector<16x32xf32>
    %104 = arith.mulf %23, %95 : vector<16x32xf32>
    %105 = tpu.concatenate %23, %95, %103, %104 in 1 : vector<16x32xf32>, vector<16x32xf32>, vector<16x32xf32>, vector<16x32xf32> -> vector<16x128xf32>
    %106 = tpu.concatenate %102, %105 in 0 : vector<16x128xf32>, vector<16x128xf32> -> vector<32x128xf32>
    %107 = arith.truncf %106 : vector<32x128xf32> to vector<32x128xbf16>
    %cst_40 = arith.constant dense<0.000000e+00> : vector<32x32xf32>
    %108 = tpu.matmul %107, %98, %cst_40 {dimension_numbers = #tpu.dot_dimension_numbers<[1], [0], [0], [1], [0, 0, 1, 1], [], []>} : vector<32x128xbf16>, vector<128x32xbf16>, vector<32x32xf32> -> vector<32x32xf32>
    %109 = vector.broadcast %99 : vector<1x32xf32> to vector<32x32xf32>
    %110 = arith.addf %108, %109 : vector<32x32xf32>
    %cst_41 = arith.constant 0.000000e+00 : f32
    %111 = vector.broadcast %cst_41 : f32 to vector<32x32xf32>
    %112 = arith.maximumf %110, %111 : vector<32x32xf32>
    %113 = arith.truncf %112 : vector<32x32xf32> to vector<32x32xbf16>
    %c64 = arith.constant 64 : index
    %c0_42 = arith.constant 0 : index
    %114 = vector.load %arg5[%c64, %c0_42] : memref<288x32xbf16, #tpu.memory_space<vmem>>, vector<32x32xbf16>
    %c2 = arith.constant 2 : index
    %c0_43 = arith.constant 0 : index
    %115 = vector.load %arg6[%c2, %c0_43] : memref<8x32xf32, #tpu.memory_space<vmem>>, vector<1x32xf32>
    %c96 = arith.constant 96 : index
    %c0_44 = arith.constant 0 : index
    %116 = vector.load %arg5[%c96, %c0_44] : memref<288x32xbf16, #tpu.memory_space<vmem>>, vector<32x32xbf16>
    %c3 = arith.constant 3 : index
    %c0_45 = arith.constant 0 : index
    %117 = vector.load %arg6[%c3, %c0_45] : memref<8x32xf32, #tpu.memory_space<vmem>>, vector<1x32xf32>
    %cst_46 = arith.constant dense<0.000000e+00> : vector<32x32xf32>
    %118 = tpu.matmul %113, %114, %cst_46 {dimension_numbers = #tpu.dot_dimension_numbers<[1], [0], [0], [1], [0, 0, 1, 1], [], []>} : vector<32x32xbf16>, vector<32x32xbf16>, vector<32x32xf32> -> vector<32x32xf32>
    %119 = arith.truncf %118 : vector<32x32xf32> to vector<32x32xbf16>
    %cst_47 = arith.constant dense<0.000000e+00> : vector<32x32xf32>
    %120 = tpu.matmul %0, %119, %cst_47 {dimension_numbers = #tpu.dot_dimension_numbers<[1], [0], [0], [1], [0, 0, 1, 1], [], []>} : vector<32x32xbf16>, vector<32x32xbf16>, vector<32x32xf32> -> vector<32x32xf32>
    %121 = vector.broadcast %115 : vector<1x32xf32> to vector<32x32xf32>
    %122 = arith.addf %120, %121 : vector<32x32xf32>
    %cst_48 = arith.constant 0.000000e+00 : f32
    %123 = vector.broadcast %cst_48 : f32 to vector<32x32xf32>
    %124 = arith.maximumf %122, %123 : vector<32x32xf32>
    %125 = arith.truncf %124 : vector<32x32xf32> to vector<32x32xbf16>
    %cst_49 = arith.constant dense<0.000000e+00> : vector<32x32xf32>
    %126 = tpu.matmul %125, %116, %cst_49 {dimension_numbers = #tpu.dot_dimension_numbers<[1], [0], [0], [1], [0, 0, 1, 1], [], []>} : vector<32x32xbf16>, vector<32x32xbf16>, vector<32x32xf32> -> vector<32x32xf32>
    %127 = arith.truncf %126 : vector<32x32xf32> to vector<32x32xbf16>
    %cst_50 = arith.constant dense<0.000000e+00> : vector<32x32xf32>
    %128 = tpu.matmul %0, %127, %cst_50 {dimension_numbers = #tpu.dot_dimension_numbers<[1], [0], [0], [1], [0, 0, 1, 1], [], []>} : vector<32x32xbf16>, vector<32x32xbf16>, vector<32x32xf32> -> vector<32x32xf32>
    %129 = vector.broadcast %117 : vector<1x32xf32> to vector<32x32xf32>
    %130 = arith.addf %128, %129 : vector<32x32xf32>
    %cst_51 = arith.constant 0.000000e+00 : f32
    %131 = vector.broadcast %cst_51 : f32 to vector<32x32xf32>
    %132 = arith.maximumf %130, %131 : vector<32x32xf32>
    %133 = tpu.iota {dimensions = array<i32: 1>} : vector<1x32xi32>
    %c0_52 = arith.constant 0 : index
    %134 = memref.load %arg4[%c0_52] : memref<4xi32, #tpu.memory_space<smem>>
    %135 = vector.broadcast %134 : i32 to vector<1x32xi32>
    %136 = arith.cmpi eq, %133, %135 : vector<1x32xi32>
    %137 = arith.extui %136 : vector<1x32xi1> to vector<1x32xi32>
    %138 = arith.sitofp %137 : vector<1x32xi32> to vector<1x32xf32>
    %c1_53 = arith.constant 1 : index
    %139 = memref.load %arg4[%c1_53] : memref<4xi32, #tpu.memory_space<smem>>
    %140 = vector.broadcast %139 : i32 to vector<1x32xi32>
    %141 = arith.cmpi eq, %133, %140 : vector<1x32xi32>
    %142 = arith.extui %141 : vector<1x32xi1> to vector<1x32xi32>
    %143 = arith.sitofp %142 : vector<1x32xi32> to vector<1x32xf32>
    %c2_54 = arith.constant 2 : index
    %144 = memref.load %arg4[%c2_54] : memref<4xi32, #tpu.memory_space<smem>>
    %145 = vector.broadcast %144 : i32 to vector<1x32xi32>
    %146 = arith.cmpi eq, %133, %145 : vector<1x32xi32>
    %147 = arith.extui %146 : vector<1x32xi1> to vector<1x32xi32>
    %148 = arith.sitofp %147 : vector<1x32xi32> to vector<1x32xf32>
    %c3_55 = arith.constant 3 : index
    %149 = memref.load %arg4[%c3_55] : memref<4xi32, #tpu.memory_space<smem>>
    %150 = vector.broadcast %149 : i32 to vector<1x32xi32>
    %151 = arith.cmpi eq, %133, %150 : vector<1x32xi32>
    %152 = arith.extui %151 : vector<1x32xi1> to vector<1x32xi32>
    %153 = arith.sitofp %152 : vector<1x32xi32> to vector<1x32xf32>
    %154 = tpu.concatenate %138, %143, %148, %153 in 0 : vector<1x32xf32>, vector<1x32xf32>, vector<1x32xf32>, vector<1x32xf32> -> vector<4x32xf32>
    %cst_56 = arith.constant dense<0.000000e+00> : vector<4x32xf32>
    %155 = tpu.matmul %154, %132, %cst_56 {dimension_numbers = #tpu.dot_dimension_numbers<[1], [0], [0], [1], [0, 0, 1, 1], [], []>} : vector<4x32xf32>, vector<32x32xf32>, vector<4x32xf32> -> vector<4x32xf32>
    %c0_57 = arith.constant 0 : index
    %c0_58 = arith.constant 0 : index
    %156 = vector.load %arg2[%c0_57, %c0_58] : memref<2x32xf32, #tpu.memory_space<vmem>>, vector<2x32xf32>
    %157 = vector.extract_strided_slice %155 {offsets = [0, 0], sizes = [2, 32], strides = [1, 1]} : vector<4x32xf32> to vector<2x32xf32>
    %158 = vector.extract_strided_slice %155 {offsets = [2, 0], sizes = [2, 32], strides = [1, 1]} : vector<4x32xf32> to vector<2x32xf32>
    %159 = tpu.concatenate %156, %157, %158 in 1 : vector<2x32xf32>, vector<2x32xf32>, vector<2x32xf32> -> vector<2x96xf32>
    %cst_59 = arith.constant dense<0.000000e+00> : vector<2xf32>
    %160 = vector.multi_reduction <add>, %159, %cst_59 [1] : vector<2x96xf32> to vector<2xf32>
    %161 = vector.shape_cast %160 : vector<2xf32> to vector<2x1xf32>
    %cst_60 = arith.constant 9.600000e+01 : f32
    %162 = vector.broadcast %cst_60 : f32 to vector<2x1xf32>
    %163 = arith.divf %161, %162 : vector<2x1xf32>
    %164 = vector.broadcast %163 : vector<2x1xf32> to vector<2x96xf32>
    %165 = arith.subf %159, %164 : vector<2x96xf32>
    %166 = arith.mulf %165, %165 : vector<2x96xf32>
    %cst_61 = arith.constant dense<0.000000e+00> : vector<2xf32>
    %167 = vector.multi_reduction <add>, %166, %cst_61 [1] : vector<2x96xf32> to vector<2xf32>
    %168 = vector.shape_cast %167 : vector<2xf32> to vector<2x1xf32>
    %cst_62 = arith.constant 9.600000e+01 : f32
    %169 = vector.broadcast %cst_62 : f32 to vector<2x1xf32>
    %170 = arith.divf %168, %169 : vector<2x1xf32>
    %171 = vector.broadcast %163 : vector<2x1xf32> to vector<2x96xf32>
    %172 = arith.subf %159, %171 : vector<2x96xf32>
    %cst_63 = arith.constant 9.99999974E-6 : f32
    %173 = vector.broadcast %cst_63 : f32 to vector<2x1xf32>
    %174 = arith.addf %170, %173 : vector<2x1xf32>
    %175 = math.rsqrt %174 : vector<2x1xf32>
    %176 = vector.broadcast %175 : vector<2x1xf32> to vector<2x96xf32>
    %177 = arith.mulf %172, %176 : vector<2x96xf32>
    %c0_64 = arith.constant 0 : index
    %c0_65 = arith.constant 0 : index
    %178 = vector.load %arg7[%c0_64, %c0_65] : memref<2x96xf32, #tpu.memory_space<vmem>>, vector<1x96xf32>
    %179 = vector.broadcast %178 : vector<1x96xf32> to vector<2x96xf32>
    %180 = arith.mulf %177, %179 : vector<2x96xf32>
    %c1_66 = arith.constant 1 : index
    %c0_67 = arith.constant 0 : index
    %181 = vector.load %arg7[%c1_66, %c0_67] : memref<2x96xf32, #tpu.memory_space<vmem>>, vector<1x96xf32>
    %182 = vector.broadcast %181 : vector<1x96xf32> to vector<2x96xf32>
    %183 = arith.addf %180, %182 : vector<2x96xf32>
    %c0_68 = arith.constant 0 : index
    %c0_69 = arith.constant 0 : index
    %184 = vector.load %arg8[%c0_68, %c0_69] : memref<97x4xf32, #tpu.memory_space<vmem>>, vector<96x4xf32>
    %cst_70 = arith.constant dense<0.000000e+00> : vector<2x4xf32>
    %185 = tpu.matmul %183, %184, %cst_70 {dimension_numbers = #tpu.dot_dimension_numbers<[1], [0], [0], [1], [0, 0, 1, 1], [], []>} : vector<2x96xf32>, vector<96x4xf32>, vector<2x4xf32> -> vector<2x4xf32>
    %c96_71 = arith.constant 96 : index
    %c0_72 = arith.constant 0 : index
    %186 = vector.load %arg8[%c96_71, %c0_72] : memref<97x4xf32, #tpu.memory_space<vmem>>, vector<1x4xf32>
    %187 = vector.broadcast %186 : vector<1x4xf32> to vector<2x4xf32>
    %188 = arith.addf %185, %187 : vector<2x4xf32>
    %c0_73 = arith.constant 0 : index
    %c0_74 = arith.constant 0 : index
    %189 = vector.load %arg9[%c0_73, %c0_74] : memref<2x4xf32, #tpu.memory_space<vmem>>, vector<2x4xf32>
    tpu.vector_store %arg9[%c0_73, %c0_74], %188 {strides = array<i32>} : memref<2x4xf32, #tpu.memory_space<vmem>>, vector<2x4xf32>,
    return
  }
}

</mosaic_0001>

<llo_original>
// kernel: word_level_net_forward.1
$region0: #{word_level_net_forward.1}
  #allocation0 [shape = 'u32[]', space=smem, size = 0x4, offset = 0x4, fixed_abs, tag = 'smem constant byte address 0x4 - core index']
  #allocation1 [shape = 'u32[144,128]{1,0:T(1,128)}', space=vmem, size = 0x12000, scoped, tag = 'internal scratch']
  %s0 = inlined_call_operand.vmem [shape: f32[32,32], index: 0, kind: input, shape index: {}]
  %s1 = inlined_call_operand.vmem [shape: f32[2,16,1], index: 1, kind: input, shape index: {}]
  %s2 = inlined_call_operand.vmem [shape: f32[2,32], index: 2, kind: input, shape index: {}]
  %s3 = inlined_call_operand.vmem [shape: bf16[32,32], index: 3, kind: input, shape index: {}]
  %s4 = inlined_call_operand.vmem [shape: s32[4], index: 4, kind: input, shape index: {}]
  %s5 = inlined_call_operand.vmem [shape: bf16[288,32], index: 5, kind: input, shape index: {}]
  %s6 = inlined_call_operand.vmem [shape: f32[8,32], index: 6, kind: input, shape index: {}]
  %s7 = inlined_call_operand.vmem [shape: f32[2,96], index: 7, kind: input, shape index: {}]
  %s8 = inlined_call_operand.vmem [shape: f32[97,4], index: 8, kind: input, shape index: {}]
  %s9 = inlined_call_operand.hbm [shape: f32[2,4], index: 9, kind: output, shape index: {}]
  %s10 = sld [smem:[#allocation0]]
  $region50: #{word_level_net_forward.1} parent=0
    _
  %s12 = ssub.s32 1, %s10
  %s13 = scalar_select 0, %s12, %s10
  $region1: #{word_level_net_forward.1} parent=0
    #allocation2 [shape = 'u8[512]{0}', space=smem, size = 0x200, scoped, tag = 'input window, operand 4, single buffered']
    #allocation3 [shape = 's32[1]{0}', space=sflag, size = 0x4, scoped, tag = 'scoped memory for word_level_net_forward.1']
    #allocation4 [shape = 's32[1]{0}', space=sflag, size = 0x4, scoped, tag = 'scoped memory for word_level_net_forward.1']
    #allocation5 [shape = 'u8[1024]{0}', space=vmem, size = 0x400, scoped, tag = 'output window, operand 0, single buffered']
    %14 = vsyncpa [#allocation4], 0
    %15 = vsyncpa [#allocation3], 0
    // Predicated region
    $region2: #{word_level_net_forward.1} parent=1 // pred_check
      _
    $region3: #{word_level_net_forward.1} parent=1 // pred_check_branch
      %17 = sbr.rel (0) target = $region5
    $region4: #{word_level_net_forward.1} parent=1 // pred_region
      _
    $region5: #{word_level_net_forward.1} parent=1 // pred_fallthru
      _
    // Predicated region
    $region6: #{word_level_net_forward.1} parent=1 // pred_check
      _
    $region7: #{word_level_net_forward.1} parent=1 // pred_check_branch
      %19 = sbr.rel (0) target = $region9
    $region8: #{word_level_net_forward.1} parent=1 // pred_region
      _
    $region9: #{word_level_net_forward.1} parent=1 // pred_fallthru
      _
    // Predicated region
    $region10: #{word_level_net_forward.1} parent=1 // pred_check
      _
    $region11: #{word_level_net_forward.1} parent=1 // pred_check_branch
      %21 = sbr.rel (0) target = $region13
    $region12: #{word_level_net_forward.1} parent=1 // pred_region
      _
    $region13: #{word_level_net_forward.1} parent=1 // pred_fallthru
      _
    // Predicated region
    $region14: #{word_level_net_forward.1} parent=1 // pred_check
      _
    $region15: #{word_level_net_forward.1} parent=1 // pred_check_branch
      %23 = sbr.rel (0) target = $region17
    $region16: #{word_level_net_forward.1} parent=1 // pred_region
      _
    $region17: #{word_level_net_forward.1} parent=1 // pred_fallthru
      _
    // Predicated region
    $region18: #{word_level_net_forward.1} parent=1 // pred_check
      _
    $region19: #{word_level_net_forward.1} parent=1 // pred_check_branch
      %25 = sbr.rel (0) target = $region21
    $region20: #{word_level_net_forward.1} parent=1 // pred_region
      %s27 = ssub.s32 16, 16
      %28 = vsyncadd [#allocation4], %s27
      %s30 = sshll.u32 %s4, 4
      %s31 = int_to_ptr.vmem [resolvable:$true] %s30
      %33 = dma.vmem_to_smem %s31, 16, [#allocation2], [#allocation4]
    $region21: #{word_level_net_forward.1} parent=1 // pred_fallthru
      _
    // Predicated region
    $region22: #{word_level_net_forward.1} parent=1 // pred_check
      _
    $region23: #{word_level_net_forward.1} parent=1 // pred_check_branch
      %35 = sbr.rel (0) target = $region25
    $region24: #{word_level_net_forward.1} parent=1 // pred_region
      _
    $region25: #{word_level_net_forward.1} parent=1 // pred_fallthru
      _
    // Predicated region
    $region26: #{word_level_net_forward.1} parent=1 // pred_check
      _
    $region27: #{word_level_net_forward.1} parent=1 // pred_check_branch
      %37 = sbr.rel (0) target = $region29
    $region28: #{word_level_net_forward.1} parent=1 // pred_region
      _
    $region29: #{word_level_net_forward.1} parent=1 // pred_fallthru
      _
    // Predicated region
    $region30: #{word_level_net_forward.1} parent=1 // pred_check
      _
    $region31: #{word_level_net_forward.1} parent=1 // pred_check_branch
      %39 = sbr.rel (0) target = $region33
    $region32: #{word_level_net_forward.1} parent=1 // pred_region
      _
    $region33: #{word_level_net_forward.1} parent=1 // pred_fallthru
      _
    // Predicated region
    $region34: #{word_level_net_forward.1} parent=1 // pred_check
      _
    $region35: #{word_level_net_forward.1} parent=1 // pred_check_branch
      %41 = sbr.rel (0) target = $region37
    $region36: #{word_level_net_forward.1} parent=1 // pred_region
      _
    $region37: #{word_level_net_forward.1} parent=1 // pred_fallthru
      _
    // Predicated region
    $region38: #{word_level_net_forward.1} parent=1 // pred_check
      _
    $region39: #{word_level_net_forward.1} parent=1 // pred_check_branch
      %43 = sbr.rel (0) target = $region41
    $region40: #{word_level_net_forward.1} parent=1 // pred_region
      %44 = dma.done [#allocation4], 16
    $region41: #{word_level_net_forward.1} parent=1 // pred_fallthru
      _
    %45 = sfence
    %v47 = vld [vmem:[%s3] sm:$0xf]
    %v48 = vld [vmem:[%s3 + $0x4] sm:$0xf]
    %v49 = vld [vmem:[%s3 + $0x8] sm:$0xf]
    %v50 = vld [vmem:[%s3 + $0xc] sm:$0xf]
    %v51 = vld [vmem:[%s0] sm:$0xff]
    %v52 = vld [vmem:[%s0 + $0x8] sm:$0xff]
    %v53 = vld [vmem:[%s0 + $0x10] sm:$0xff]
    %v54 = vld [vmem:[%s0 + $0x18] sm:$0xff]
    %v55 = vpack.c.bf16 %v52, %v51
    %v56 = vpack.c.bf16 %v54, %v53
    %v57 = vld [vmem:[%s5] sm:$0xf]
    %v58 = vld [vmem:[%s5 + $0x4] sm:$0xf]
    %v59 = vld [vmem:[%s5 + $0x8] sm:$0xf]
    %v60 = vld [vmem:[%s5 + $0xc] sm:$0xf]
    %v61 = vld [vmem:[%s6] sm:$0x1]
    %v62 = vld [vmem:[%s5 + $0x10] sm:$0xf]
    %v63 = vld [vmem:[%s5 + $0x14] sm:$0xf]
    %v64 = vld [vmem:[%s5 + $0x18] sm:$0xf]
    %v65 = vld [vmem:[%s5 + $0x1c] sm:$0xf]
    %v66 = vld [vmem:[%s6 + $0x1] sm:$0x1]
    %v71 = vunpack.c.l.b16 %v57
    %v72 = vunpack.c.l.b16 %v58
    %v73 = vunpack.c.l.b16 %v59
    %v74 = vunpack.c.l.b16 %v60
    %v75 = vpack.c.b16 %v72, %v71
    %v76 = vpack.c.b16 %v74, %v73
    %vm79 = vcmask 261120
    %v81 = vsel %vm79, %v55, 0
    %v84 = vsel %vm79, %v56, 0
    %86 = vmatprep.subr.bf16.mxu0 0
    %87 = vmatpush1.bf16.msra.mxu0 0
    %88 = vmatprep.subr.bf16.mxu0 0
    %89 = vmatpush1.bf16.msra.mxu0 0
    %90 = vmatprep.subr.bf16.mxu0 0
    %91 = vmatpush1.bf16.msra.mxu0 0
    %92 = vmatprep.subr.bf16.mxu0 0
    %93 = vmatpush1.bf16.msra.mxu0 0
    %94 = vmatprep.subr.bf16.mxu0 0
    %95 = vmatpush1.bf16.msra.mxu0 0
    %96 = vmatprep.subr.bf16.mxu0 0
    %97 = vmatpush1.bf16.msra.mxu0 0
    %98 = vmatprep.subr.bf16.mxu0 0
    %99 = vmatpush1.bf16.msra.mxu0 %v76
    %100 = vmatprep.subr.bf16.mxu0 0
    %101 = vmatpush1.bf16.msra.mxu0 %v75
    %102 = vmatprep.subr.bf16.mxu0 0
    %103 = vmatpush2.bf16.msra.mxu0 0
    %104 = vmatprep.subr.bf16.mxu0 0
    %105 = vmatpush2.bf16.msra.mxu0 0
    %106 = vmatprep.subr.bf16.mxu0 0
    %107 = vmatpush2.bf16.msra.mxu0 0
    %108 = vmatprep.subr.bf16.mxu0 0
    %109 = vmatpush2.bf16.msra.mxu0 0
    %110 = vmatprep.subr.bf16.mxu0 0
    %111 = vmatpush2.bf16.msra.mxu0 0
    %112 = vmatprep.subr.bf16.mxu0 0
    %113 = vmatpush2.bf16.msra.mxu0 0
    %114 = vmatprep.subr.bf16.mxu0 0
    %115 = vmatpush2.bf16.msra.mxu0 0
    %116 = vmatprep.subr.bf16.mxu0 0
    %117 = vmatpush2.bf16.msra.mxu0 0
    %118 = vmatprep.mubr.bf16.mxu0 0
    %119 = vmatmul.mubr.bf16.gmra.mxu0 %v81
    %v120 = vpop.f32.mrf.mxu0
    %v121 = vadd.f32 0.0, %v120
    %v122 = vpop.f32.mrf.mxu0
    %v123 = vpop.f32.mrf.mxu0
    %v124 = vadd.f32 0.0, %v123
    %v125 = vpop.f32.mrf.mxu0
    %126 = vmatprep.mubr.bf16.mxu0 0
    %127 = vmatmul.mubr.bf16.gmra.mxu0 %v84
    %v128 = vpop.f32.mrf.mxu0
    %v129 = vadd.f32 0.0, %v128
    %v130 = vpop.f32.mrf.mxu0
    %v131 = vpop.f32.mrf.mxu0
    %v132 = vadd.f32 0.0, %v131
    %v133 = vpop.f32.mrf.mxu0
    %134 = vdwg.mxu0
    %v135 = vpack.c.bf16 %v124, %v121
    %v136 = vpack.c.bf16 %v132, %v129
    %v137 = vlaneseq
    %v138 = vshrl.u32 %v137, 7
    %v139 = vsub.s32 0, %v138
    %v140 = vrot.slane %v61, %v139
    %v145 = vunpack.c.l.b16 %v47
    %v146 = vunpack.c.l.b16 %v48
    %v147 = vunpack.c.l.b16 %v49
    %v148 = vunpack.c.l.b16 %v50
    %v149 = vpack.c.b16 %v146, %v145
    %v150 = vpack.c.b16 %v148, %v147
    %v152 = vsel %vm79, %v149, 0
    %v155 = vsel %vm79, %v150, 0
    %157 = vmatprep.subr.bf16.mxu0 0
    %158 = vmatpush1.bf16.msra.mxu0 0
    %159 = vmatprep.subr.bf16.mxu0 0
    %160 = vmatpush1.bf16.msra.mxu0 0
    %161 = vmatprep.subr.bf16.mxu0 0
    %162 = vmatpush1.bf16.msra.mxu0 0
    %163 = vmatprep.subr.bf16.mxu0 0
    %164 = vmatpush1.bf16.msra.mxu0 0
    %165 = vmatprep.subr.bf16.mxu0 0
    %166 = vmatpush1.bf16.msra.mxu0 0
    %167 = vmatprep.subr.bf16.mxu0 0
    %168 = vmatpush1.bf16.msra.mxu0 0
    %169 = vmatprep.subr.bf16.mxu0 0
    %170 = vmatpush1.bf16.msra.mxu0 %v136
    %171 = vmatprep.subr.bf16.mxu0 0
    %172 = vmatpush1.bf16.msra.mxu0 %v135
    %173 = vmatprep.subr.bf16.mxu0 0
    %174 = vmatpush2.bf16.msra.mxu0 0
    %175 = vmatprep.subr.bf16.mxu0 0
    %176 = vmatpush2.bf16.msra.mxu0 0
    %177 = vmatprep.subr.bf16.mxu0 0
    %178 = vmatpush2.bf16.msra.mxu0 0
    %179 = vmatprep.subr.bf16.mxu0 0
    %180 = vmatpush2.bf16.msra.mxu0 0
    %181 = vmatprep.subr.bf16.mxu0 0
    %182 = vmatpush2.bf16.msra.mxu0 0
    %183 = vmatprep.subr.bf16.mxu0 0
    %184 = vmatpush2.bf16.msra.mxu0 0
    %185 = vmatprep.subr.bf16.mxu0 0
    %186 = vmatpush2.bf16.msra.mxu0 0
    %187 = vmatprep.subr.bf16.mxu0 0
    %188 = vmatpush2.bf16.msra.mxu0 0
    %189 = vmatprep.mubr.bf16.mxu0 0
    %190 = vmatmul.mubr.bf16.gmra.mxu0 %v152
    %v191 = vpop.f32.mrf.mxu0
    %v192 = vadd.f32 %v140, %v191
    %v193 = vpop.f32.mrf.mxu0
    %v194 = vpop.f32.mrf.mxu0
    %v195 = vadd.f32 %v140, %v194
    %v196 = vpop.f32.mrf.mxu0
    %197 = vmatprep.mubr.bf16.mxu0 0
    %198 = vmatmul.mubr.bf16.gmra.mxu0 %v155
    %v199 = vpop.f32.mrf.mxu0
    %v200 = vadd.f32 %v140, %v199
    %v201 = vpop.f32.mrf.mxu0
    %v202 = vpop.f32.mrf.mxu0
    %v203 = vadd.f32 %v140, %v202
    %v204 = vpop.f32.mrf.mxu0
    %205 = vdwg.mxu0
    %v206 = vmax.f32 %v192, 0.0
    %v207 = vmax.f32 %v195, 0.0
    %v208 = vmax.f32 %v200, 0.0
    %v209 = vmax.f32 %v203, 0.0
    %v210 = vpack.c.bf16 %v207, %v206
    %v211 = vpack.c.bf16 %v209, %v208
    %v216 = vunpack.c.l.b16 %v62
    %v217 = vunpack.c.l.b16 %v63
    %v218 = vunpack.c.l.b16 %v64
    %v219 = vunpack.c.l.b16 %v65
    %v220 = vpack.c.b16 %v217, %v216
    %v221 = vpack.c.b16 %v219, %v218
    %v225 = vsel %vm79, %v210, 0
    %v228 = vsel %vm79, %v211, 0
    %230 = vmatprep.subr.bf16.mxu0 0
    %231 = vmatpush1.bf16.msra.mxu0 0
    %232 = vmatprep.subr.bf16.mxu0 0
    %233 = vmatpush1.bf16.msra.mxu0 0
    %234 = vmatprep.subr.bf16.mxu0 0
    %235 = vmatpush1.bf16.msra.mxu0 0
    %236 = vmatprep.subr.bf16.mxu0 0
    %237 = vmatpush1.bf16.msra.mxu0 0
    %238 = vmatprep.subr.bf16.mxu0 0
    %239 = vmatpush1.bf16.msra.mxu0 0
    %240 = vmatprep.subr.bf16.mxu0 0
    %241 = vmatpush1.bf16.msra.mxu0 0
    %242 = vmatprep.subr.bf16.mxu0 0
    %243 = vmatpush1.bf16.msra.mxu0 %v221
    %244 = vmatprep.subr.bf16.mxu0 0
    %245 = vmatpush1.bf16.msra.mxu0 %v220
    %246 = vmatprep.subr.bf16.mxu0 0
    %247 = vmatpush2.bf16.msra.mxu0 0
    %248 = vmatprep.subr.bf16.mxu0 0
    %249 = vmatpush2.bf16.msra.mxu0 0
    %250 = vmatprep.subr.bf16.mxu0 0
    %251 = vmatpush2.bf16.msra.mxu0 0
    %252 = vmatprep.subr.bf16.mxu0 0
    %253 = vmatpush2.bf16.msra.mxu0 0
    %254 = vmatprep.subr.bf16.mxu0 0
    %255 = vmatpush2.bf16.msra.mxu0 0
    %256 = vmatprep.subr.bf16.mxu0 0
    %257 = vmatpush2.bf16.msra.mxu0 0
    %258 = vmatprep.subr.bf16.mxu0 0
    %259 = vmatpush2.bf16.msra.mxu0 0
    %260 = vmatprep.subr.bf16.mxu0 0
    %261 = vmatpush2.bf16.msra.mxu0 0
    %262 = vmatprep.mubr.bf16.mxu0 0
    %263 = vmatmul.mubr.bf16.gmra.mxu0 %v225
    %v264 = vpop.f32.mrf.mxu0
    %v265 = vadd.f32 0.0, %v264
    %v266 = vpop.f32.mrf.mxu0
    %v267 = vpop.f32.mrf.mxu0
    %v268 = vadd.f32 0.0, %v267
    %v269 = vpop.f32.mrf.mxu0
    %270 = vmatprep.mubr.bf16.mxu0 0
    %271 = vmatmul.mubr.bf16.gmra.mxu0 %v228
    %v272 = vpop.f32.mrf.mxu0
    %v273 = vadd.f32 0.0, %v272
    %v274 = vpop.f32.mrf.mxu0
    %v275 = vpop.f32.mrf.mxu0
    %v276 = vadd.f32 0.0, %v275
    %v277 = vpop.f32.mrf.mxu0
    %278 = vdwg.mxu0
    %v279 = vpack.c.bf16 %v268, %v265
    %v280 = vpack.c.bf16 %v276, %v273
    %v281 = vlaneseq
    %v282 = vshrl.u32 %v281, 7
    %v283 = vsub.s32 0, %v282
    %v284 = vrot.slane %v66, %v283
    %285 = vmatprep.subr.bf16.mxu0 0
    %286 = vmatpush1.bf16.msra.mxu0 0
    %287 = vmatprep.subr.bf16.mxu0 0
    %288 = vmatpush1.bf16.msra.mxu0 0
    %289 = vmatprep.subr.bf16.mxu0 0
    %290 = vmatpush1.bf16.msra.mxu0 0
    %291 = vmatprep.subr.bf16.mxu0 0
    %292 = vmatpush1.bf16.msra.mxu0 0
    %293 = vmatprep.subr.bf16.mxu0 0
    %294 = vmatpush1.bf16.msra.mxu0 0
    %295 = vmatprep.subr.bf16.mxu0 0
    %296 = vmatpush1.bf16.msra.mxu0 0
    %297 = vmatprep.subr.bf16.mxu0 0
    %298 = vmatpush1.bf16.msra.mxu0 %v280
    %299 = vmatprep.subr.bf16.mxu0 0
    %300 = vmatpush1.bf16.msra.mxu0 %v279
    %301 = vmatprep.subr.bf16.mxu0 0
    %302 = vmatpush2.bf16.msra.mxu0 0
    %303 = vmatprep.subr.bf16.mxu0 0
    %304 = vmatpush2.bf16.msra.mxu0 0
    %305 = vmatprep.subr.bf16.mxu0 0
    %306 = vmatpush2.bf16.msra.mxu0 0
    %307 = vmatprep.subr.bf16.mxu0 0
    %308 = vmatpush2.bf16.msra.mxu0 0
    %309 = vmatprep.subr.bf16.mxu0 0
    %310 = vmatpush2.bf16.msra.mxu0 0
    %311 = vmatprep.subr.bf16.mxu0 0
    %312 = vmatpush2.bf16.msra.mxu0 0
    %313 = vmatprep.subr.bf16.mxu0 0
    %314 = vmatpush2.bf16.msra.mxu0 0
    %315 = vmatprep.subr.bf16.mxu0 0
    %316 = vmatpush2.bf16.msra.mxu0 0
    %317 = vmatprep.mubr.bf16.mxu0 0
    %318 = vmatmul.mubr.bf16.gmra.mxu0 %v152
    %v319 = vpop.f32.mrf.mxu0
    %v320 = vadd.f32 %v284, %v319
    %v321 = vpop.f32.mrf.mxu0
    %v322 = vpop.f32.mrf.mxu0
    %v323 = vadd.f32 %v284, %v322
    %v324 = vpop.f32.mrf.mxu0
    %325 = vmatprep.mubr.bf16.mxu0 0
    %326 = vmatmul.mubr.bf16.gmra.mxu0 %v155
    %v327 = vpop.f32.mrf.mxu0
    %v328 = vadd.f32 %v284, %v327
    %v329 = vpop.f32.mrf.mxu0
    %v330 = vpop.f32.mrf.mxu0
    %v331 = vadd.f32 %v284, %v330
    %v332 = vpop.f32.mrf.mxu0
    %333 = vdwg.mxu0
    %v334 = vmax.f32 %v320, 0.0
    %v335 = vmax.f32 %v323, 0.0
    %v336 = vmax.f32 %v328, 0.0
    %v337 = vmax.f32 %v331, 0.0
    %v338 = vpack.c.bf16 %v335, %v334
    %v339 = vpack.c.bf16 %v337, %v336
    %v340 = vld [vmem:[%s5 + $0x40] sm:$0xf]
    %v341 = vld [vmem:[%s5 + $0x44] sm:$0xf]
    %v342 = vld [vmem:[%s5 + $0x48] sm:$0xf]
    %v343 = vld [vmem:[%s5 + $0x4c] sm:$0xf]
    %v344 = vld [vmem:[%s6 + $0x4] sm:$0x1]
    %v345 = vld [vmem:[%s6 + $0x5] sm:$0x1]
    %v346 = vld [vmem:[%s6 + $0x7] sm:$0x1]
    %v347 = vlaneseq
    %v348 = vshrl.u32 %v347, 7
    %v349 = vsub.s32 0, %v348
    %v350 = vrot.slane %v345, %v349
    %v355 = vunpack.c.l.b16 %v340
    %v356 = vunpack.c.l.b16 %v341
    %v357 = vunpack.c.l.b16 %v342
    %v358 = vunpack.c.l.b16 %v343
    %v359 = vpack.c.b16 %v356, %v355
    %v360 = vpack.c.b16 %v358, %v357
    %v364 = vsel %vm79, %v338, 0
    %366 = vmatprep.subr.bf16.mxu0 0
    %367 = vmatpush1.bf16.msra.mxu0 0
    %368 = vmatprep.subr.bf16.mxu0 0
    %369 = vmatpush1.bf16.msra.mxu0 0
    %370 = vmatprep.subr.bf16.mxu0 0
    %371 = vmatpush1.bf16.msra.mxu0 0
    %372 = vmatprep.subr.bf16.mxu0 0
    %373 = vmatpush1.bf16.msra.mxu0 0
    %374 = vmatprep.subr.bf16.mxu0 0
    %375 = vmatpush1.bf16.msra.mxu0 0
    %376 = vmatprep.subr.bf16.mxu0 0
    %377 = vmatpush1.bf16.msra.mxu0 0
    %378 = vmatprep.subr.bf16.mxu0 0
    %379 = vmatpush1.bf16.msra.mxu0 %v360
    %380 = vmatprep.subr.bf16.mxu0 0
    %381 = vmatpush1.bf16.msra.mxu0 %v359
    %382 = vmatprep.subr.bf16.mxu0 0
    %383 = vmatpush2.bf16.msra.mxu0 0
    %384 = vmatprep.subr.bf16.mxu0 0
    %385 = vmatpush2.bf16.msra.mxu0 0
    %386 = vmatprep.subr.bf16.mxu0 0
    %387 = vmatpush2.bf16.msra.mxu0 0
    %388 = vmatprep.subr.bf16.mxu0 0
    %389 = vmatpush2.bf16.msra.mxu0 0
    %390 = vmatprep.subr.bf16.mxu0 0
    %391 = vmatpush2.bf16.msra.mxu0 0
    %392 = vmatprep.subr.bf16.mxu0 0
    %393 = vmatpush2.bf16.msra.mxu0 0
    %394 = vmatprep.subr.bf16.mxu0 0
    %395 = vmatpush2.bf16.msra.mxu0 0
    %396 = vmatprep.subr.bf16.mxu0 0
    %397 = vmatpush2.bf16.msra.mxu0 0
    %398 = vmatprep.mubr.bf16.mxu0 0
    %399 = vmatmul.mubr.bf16.gmra.mxu0 %v364
    %v400 = vpop.f32.mrf.mxu0
    %v401 = vadd.f32 %v350, %v400
    %v402 = vpop.f32.mrf.mxu0
    %v403 = vpop.f32.mrf.mxu0
    %v404 = vadd.f32 %v350, %v403
    %v405 = vpop.f32.mrf.mxu0
    %406 = vdwg.mxu0
    %v407 = vpack.c.bf16 %v404, %v401
    %v408 = vlaneseq
    %v409 = vshrl.u32 %v408, 7
    %v410 = vsub.s32 0, %v409
    %v411 = vrot.slane %v344, %v410
    %v412 = vmul.f32 %v334, %v411
    %v413 = vmul.f32 %v335, %v411
    %v414 = vsel %vm79, %v412, 0.0
    %415 = vadd.xlane.f32.xlu0 %v414
    %v416 = vpop.xlane.xlu0 %415
    %v417 = vsel %vm79, %v413, 0.0
    %418 = vadd.xlane.f32.xlu0 %v417
    %v419 = vpop.xlane.xlu0 %418
    %v421 = vsel %vm79, %v407, 0
    %v424 = vsel %vm79, %v339, 0
    %426 = vmatprep.subr.bf16.mxu0 0
    %427 = vmatpush1.bf16.xpose.msra.mxu0 0
    %428 = vmatprep.subr.bf16.mxu0 0
    %429 = vmatpush1.bf16.xpose.msra.mxu0 0
    %430 = vmatprep.subr.bf16.mxu0 0
    %431 = vmatpush1.bf16.xpose.msra.mxu0 0
    %432 = vmatprep.subr.bf16.mxu0 0
    %433 = vmatpush1.bf16.xpose.msra.mxu0 0
    %434 = vmatprep.subr.bf16.mxu0 0
    %435 = vmatpush1.bf16.xpose.msra.mxu0 0
    %436 = vmatprep.subr.bf16.mxu0 0
    %437 = vmatpush1.bf16.xpose.msra.mxu0 0
    %438 = vmatprep.subr.bf16.mxu0 0
    %439 = vmatpush1.bf16.xpose.msra.mxu0 0
    %440 = vmatprep.subr.bf16.mxu0 0
    %441 = vmatpush1.bf16.xpose.msra.mxu0 %v424
    %442 = vmatprep.subr.bf16.mxu0 0
    %443 = vmatpush2.bf16.xpose.msra.mxu0 0
    %444 = vmatprep.subr.bf16.mxu0 0
    %445 = vmatpush2.bf16.xpose.msra.mxu0 0
    %446 = vmatprep.subr.bf16.mxu0 0
    %447 = vmatpush2.bf16.xpose.msra.mxu0 0
    %448 = vmatprep.subr.bf16.mxu0 0
    %449 = vmatpush2.bf16.xpose.msra.mxu0 0
    %450 = vmatprep.subr.bf16.mxu0 0
    %451 = vmatpush2.bf16.xpose.msra.mxu0 0
    %452 = vmatprep.subr.bf16.mxu0 0
    %453 = vmatpush2.bf16.xpose.msra.mxu0 0
    %454 = vmatprep.subr.bf16.mxu0 0
    %455 = vmatpush2.bf16.xpose.msra.mxu0 0
    %456 = vmatprep.subr.bf16.mxu0 0
    %457 = vmatpush2.bf16.xpose.msra.mxu0 0
    %458 = vmatprep.mubr.bf16.mxu0 0
    %459 = vmatmul.mubr.bf16.gmra.mxu0 %v421
    %v460 = vpop.f32.mrf.mxu0
    %v461 = vadd.f32 %v416, %v460
    %v462 = vpop.f32.mrf.mxu0
    %v463 = vpop.f32.mrf.mxu0
    %v464 = vadd.f32 %v419, %v463
    %v465 = vpop.f32.mrf.mxu0
    %466 = vdwg.mxu0
    %s468 = vtos %v346
    %v469 = vstv %s468
    %v471 = vadd.f32 %v461, %v469
    %v472 = vadd.f32 %v464, %v469
    %v473 = vlaneseq
    %v474 = vshrl.u32 %v473, 7
    %v475 = vadd.s32 %v474, 8
    %v476 = vlaneseq
    %v477 = vand.u32 %v476, 127
    %v478 = vshra.s32 %v474, 3
    %v479 = vshra.s32 %v475, 3
    %v480 = vshra.s32 %v477, 3
    %vm481 = vcmp.eq.s32.totalorder %v478, %v480
    %vm482 = vcmp.eq.s32.totalorder %v479, %v480
    %v483 = vsel %vm481, 1, 0
    %v484 = vsel %vm482, 1, 0
    %v485 = vcvt.s32.f32 %v483
    %v486 = vcvt.s32.f32 %v484
    %v487 = vld [vmem:[%s1] sm:$0xff]
    %v488 = vld [vmem:[%s1 + $0x8] sm:$0xff]
    %490 = vset.pattern.permute.xlu0 0
    %491 = vperm.xlu0 %490, %v487
    %v492 = vpop.permute.xlu0 %491
    %495 = vset.pattern.permute.xlu0 0
    %496 = vperm.xlu0 %495, %v488
    %v497 = vpop.permute.xlu0 %496
    %v499 = vmul.f32 %v485, %v492
    %v500 = vmul.f32 %v486, %v497
    %s501 = scalar_lea.vmem %s1, 16
    %v502 = vld [vmem:[%s501] sm:$0xff]
    %v503 = vld [vmem:[%s501 + $0x8] sm:$0xff]
    %505 = vset.pattern.permute.xlu0 0
    %506 = vperm.xlu0 %505, %v502
    %v507 = vpop.permute.xlu0 %506
    %510 = vset.pattern.permute.xlu0 0
    %511 = vperm.xlu0 %510, %v503
    %v512 = vpop.permute.xlu0 %511
    %v514 = vmul.f32 %v485, %v507
    %v515 = vmul.f32 %v486, %v512
    %v516 = vmul.f32 %v471, %v499
    %v517 = vmul.f32 %v472, %v500
    %vm518 = vcmask 130048
    %v519 = vsel %vm518, %v516, -inf
    %v520 = vsel %vm518, %v517, -inf
    %v521 = vmax.f32 %v519, %v520
    %v522 = vrot.slane %v521, 4
    %v523 = vmax.f32 %v521, %v522
    %v524 = vrot.slane %v523, 2
    %v525 = vmax.f32 %v523, %v524
    %v526 = vrot.slane %v525, 1
    %v527 = vmax.f32 %v525, %v526
    %v528 = vsub.f32 %v516, %v527
    %v529 = vsub.f32 %v517, %v527
    %v530 = vmul.f32 %v528, 1.442695
    %v531 = vpow.pop %v530
    %v532 = vmul.f32 %v529, 1.442695
    %v533 = vpow.pop %v532
    %v534 = vsel %vm518, %v531, 0.0
    %v535 = vsel %vm518, %v533, 0.0
    %v536 = vadd.f32 %v534, %v535
    %v537 = vrot.slane %v536, 4
    %v538 = vadd.f32 %v536, %v537
    %v539 = vrot.slane %v538, 2
    %v540 = vadd.f32 %v538, %v539
    %v541 = vrot.slane %v540, 1
    %v542 = vadd.f32 %v540, %v541
    %v543 = vrcp.pop %v542
    %v544 = vmul.f32 %v531, %v543
    %v545 = vmul.f32 %v533, %v543
    %v546 = vmul.f32 %v544, %v499
    %v547 = vmul.f32 %v545, %v500
    %v548 = vsel %vm518, %v546, 0.0
    %v549 = vsel %vm518, %v547, 0.0
    %v550 = vadd.f32 %v548, %v549
    %v551 = vrot.slane %v550, 4
    %v552 = vadd.f32 %v550, %v551
    %v553 = vrot.slane %v552, 2
    %v554 = vadd.f32 %v552, %v553
    %v555 = vrot.slane %v554, 1
    %v556 = vadd.f32 %v554, %v555
    %v557 = vadd.f32 %v556, 1e-13
    %v558 = vrcp.pop %v557
    %v559 = vmul.f32 %v546, %v558
    %v560 = vmul.f32 %v547, %v558
    %v561 = vmul.f32 %v471, %v514
    %v562 = vmul.f32 %v472, %v515
    %v563 = vsel %vm518, %v561, -inf
    %v564 = vsel %vm518, %v562, -inf
    %v565 = vmax.f32 %v563, %v564
    %v566 = vrot.slane %v565, 4
    %v567 = vmax.f32 %v565, %v566
    %v568 = vrot.slane %v567, 2
    %v569 = vmax.f32 %v567, %v568
    %v570 = vrot.slane %v569, 1
    %v571 = vmax.f32 %v569, %v570
    %v572 = vsub.f32 %v561, %v571
    %v573 = vsub.f32 %v562, %v571
    %v574 = vmul.f32 %v572, 1.442695
    %v575 = vpow.pop %v574
    %v576 = vmul.f32 %v573, 1.442695
    %v577 = vpow.pop %v576
    %v578 = vsel %vm518, %v575, 0.0
    %v579 = vsel %vm518, %v577, 0.0
    %v580 = vadd.f32 %v578, %v579
    %v581 = vrot.slane %v580, 4
    %v582 = vadd.f32 %v580, %v581
    %v583 = vrot.slane %v582, 2
    %v584 = vadd.f32 %v582, %v583
    %v585 = vrot.slane %v584, 1
    %v586 = vadd.f32 %v584, %v585
    %v587 = vrcp.pop %v586
    %v588 = vmul.f32 %v575, %v587
    %v589 = vmul.f32 %v577, %v587
    %v590 = vmul.f32 %v588, %v514
    %v591 = vmul.f32 %v589, %v515
    %v592 = vsel %vm518, %v590, 0.0
    %v593 = vsel %vm518, %v591, 0.0
    %v594 = vadd.f32 %v592, %v593
    %v595 = vrot.slane %v594, 4
    %v596 = vadd.f32 %v594, %v595
    %v597 = vrot.slane %v596, 2
    %v598 = vadd.f32 %v596, %v597
    %v599 = vrot.slane %v598, 1
    %v600 = vadd.f32 %v598, %v599
    %v601 = vadd.f32 %v600, 1e-13
    %v602 = vrcp.pop %v601
    %v603 = vmul.f32 %v590, %v602
    %v604 = vmul.f32 %v591, %v602
    %v605 = vpack.c.bf16 %v560, %v559
    %606 = vxpose.xlu0.c.b16.start [1/8] %v605, 128
    %607 = vxpose.xlu0.c.b16.cont [2/8] 0, 128
    %608 = vxpose.xlu0.c.b16.cont [3/8] 0, 128
    %609 = vxpose.xlu0.c.b16.cont [4/8] 0, 128
    %610 = vxpose.xlu0.c.b16.cont [5/8] 0, 128
    %611 = vxpose.xlu0.c.b16.cont [6/8] 0, 128
    %612 = vxpose.xlu0.c.b16.cont [7/8] 0, 128
    %613 = vxpose.xlu0.c.b16.end [8/8] 0, 128
    %v614 = vpop.trf.xlu0
    %v615 = vpop.trf.xlu0
    %v616 = vpop.trf.xlu0
    %v617 = vpop.trf.xlu0
    %v618 = vpop.trf.xlu0
    %v619 = vpop.trf.xlu0
    %v620 = vpop.trf.xlu0
    %v621 = vpop.trf.xlu0
    %v623 = vsel %vm518, %v614, 0
    %625 = vmatprep.subr.bf16.mxu0 0
    %626 = vmatpush1.bf16.msra.mxu0 0
    %627 = vmatprep.subr.bf16.mxu0 0
    %628 = vmatpush1.bf16.msra.mxu0 0
    %629 = vmatprep.subr.bf16.mxu0 0
    %630 = vmatpush1.bf16.msra.mxu0 0
    %631 = vmatprep.subr.bf16.mxu0 0
    %632 = vmatpush1.bf16.msra.mxu0 0
    %633 = vmatprep.subr.bf16.mxu0 0
    %634 = vmatpush1.bf16.msra.mxu0 0
    %635 = vmatprep.subr.bf16.mxu0 0
    %636 = vmatpush1.bf16.msra.mxu0 0
    %637 = vmatprep.subr.bf16.mxu0 0
    %638 = vmatpush1.bf16.msra.mxu0 0
    %639 = vmatprep.subr.bf16.mxu0 0
    %640 = vmatpush1.bf16.msra.mxu0 %v338
    %641 = vmatprep.subr.bf16.mxu0 0
    %642 = vmatpush2.bf16.msra.mxu0 0
    %643 = vmatprep.subr.bf16.mxu0 0
    %644 = vmatpush2.bf16.msra.mxu0 0
    %645 = vmatprep.subr.bf16.mxu0 0
    %646 = vmatpush2.bf16.msra.mxu0 0
    %647 = vmatprep.subr.bf16.mxu0 0
    %648 = vmatpush2.bf16.msra.mxu0 0
    %649 = vmatprep.subr.bf16.mxu0 0
    %650 = vmatpush2.bf16.msra.mxu0 0
    %651 = vmatprep.subr.bf16.mxu0 0
    %652 = vmatpush2.bf16.msra.mxu0 0
    %653 = vmatprep.subr.bf16.mxu0 0
    %654 = vmatpush2.bf16.msra.mxu0 0
    %655 = vmatprep.subr.bf16.mxu0 0
    %656 = vmatpush2.bf16.msra.mxu0 0
    %657 = vmatprep.mubr.bf16.mxu0 0
    %658 = vmatmul.mubr.bf16.gmra.mxu0 %v623
    %v659 = vpop.f32.mrf.mxu0
    %v660 = vadd.f32 0.0, %v659
    %v661 = vpop.f32.mrf.mxu0
    %v662 = vpop.f32.mrf.mxu0
    %v663 = vadd.f32 0.0, %v662
    %v664 = vpop.f32.mrf.mxu0
    %665 = vdwg.mxu0
    %v666 = vpack.c.bf16 %v604, %v603
    %v668 = vsel %vm518, %v666, 0
    %670 = vmatprep.subr.bf16.mxu0 0
    %671 = vmatpush1.bf16.msra.mxu0 0
    %672 = vmatprep.subr.bf16.mxu0 0
    %673 = vmatpush1.bf16.msra.mxu0 0
    %674 = vmatprep.subr.bf16.mxu0 0
    %675 = vmatpush1.bf16.msra.mxu0 0
    %676 = vmatprep.subr.bf16.mxu0 0
    %677 = vmatpush1.bf16.msra.mxu0 0
    %678 = vmatprep.subr.bf16.mxu0 0
    %679 = vmatpush1.bf16.msra.mxu0 0
    %680 = vmatprep.subr.bf16.mxu0 0
    %681 = vmatpush1.bf16.msra.mxu0 0
    %682 = vmatprep.subr.bf16.mxu0 0
    %683 = vmatpush1.bf16.msra.mxu0 0
    %684 = vmatprep.subr.bf16.mxu0 0
    %685 = vmatpush1.bf16.msra.mxu0 %v339
    %686 = vmatprep.subr.bf16.mxu0 0
    %687 = vmatpush2.bf16.msra.mxu0 0
    %688 = vmatprep.subr.bf16.mxu0 0
    %689 = vmatpush2.bf16.msra.mxu0 0
    %690 = vmatprep.subr.bf16.mxu0 0
    %691 = vmatpush2.bf16.msra.mxu0 0
    %692 = vmatprep.subr.bf16.mxu0 0
    %693 = vmatpush2.bf16.msra.mxu0 0
    %694 = vmatprep.subr.bf16.mxu0 0
    %695 = vmatpush2.bf16.msra.mxu0 0
    %696 = vmatprep.subr.bf16.mxu0 0
    %697 = vmatpush2.bf16.msra.mxu0 0
    %698 = vmatprep.subr.bf16.mxu0 0
    %699 = vmatpush2.bf16.msra.mxu0 0
    %700 = vmatprep.subr.bf16.mxu0 0
    %701 = vmatpush2.bf16.msra.mxu0 0
    %702 = vmatprep.mubr.bf16.mxu0 0
    %703 = vmatmul.mubr.bf16.gmra.mxu0 %v668
    %v704 = vpop.f32.mrf.mxu0
    %v705 = vadd.f32 0.0, %v704
    %v706 = vpop.f32.mrf.mxu0
    %v707 = vpop.f32.mrf.mxu0
    %v708 = vadd.f32 0.0, %v707
    %v709 = vpop.f32.mrf.mxu0
    %710 = vdwg.mxu0
    %v711 = vld [vmem:[%s5 + $0x50] sm:$0xf]
    %v712 = vld [vmem:[%s5 + $0x54] sm:$0xf]
    %v713 = vld [vmem:[%s5 + $0x58] sm:$0xf]
    %v714 = vld [vmem:[%s5 + $0x5c] sm:$0xf]
    %v715 = vld [vmem:[%s5 + $0x60] sm:$0xf]
    %v716 = vld [vmem:[%s5 + $0x64] sm:$0xf]
    %v717 = vld [vmem:[%s5 + $0x68] sm:$0xf]
    %v718 = vld [vmem:[%s5 + $0x6c] sm:$0xf]
    %v719 = vld [vmem:[%s5 + $0x70] sm:$0xf]
    %v720 = vld [vmem:[%s5 + $0x74] sm:$0xf]
    %v721 = vld [vmem:[%s5 + $0x78] sm:$0xf]
    %v722 = vld [vmem:[%s5 + $0x7c] sm:$0xf]
    %v723 = vld [vmem:[%s5 + $0x80] sm:$0xf]
    %v724 = vld [vmem:[%s5 + $0x84] sm:$0xf]
    %v725 = vld [vmem:[%s5 + $0x88] sm:$0xf]
    %v726 = vld [vmem:[%s5 + $0x8c] sm:$0xf]
    %v727 = vld [vmem:[%s6 + $0x6] sm:$0x1]
    %v728 = vsub.f32 %v334, %v705
    %v729 = vsub.f32 %v335, %v708
    %v730 = vmul.f32 %v334, %v705
    %v731 = vmul.f32 %v335, %v708
    %734 = vrot.lane.b32.xlu0 %v705, 32
    %v735 = vpop.permute.xlu0 %734
    %736 = vrot.lane.b32.xlu0 %v708, 32
    %v737 = vpop.permute.xlu0 %736
    %742 = vrot.lane.b32.xlu0 %v728, 64
    %v743 = vpop.permute.xlu0 %742
    %744 = vrot.lane.b32.xlu0 %v729, 64
    %v745 = vpop.permute.xlu0 %744
    %750 = vrot.lane.b32.xlu0 %v730, 96
    %v751 = vpop.permute.xlu0 %750
    %752 = vrot.lane.b32.xlu0 %v731, 96
    %v753 = vpop.permute.xlu0 %752
    %v756 = vsel %vm79, %v334, %v735
    %v757 = vsel %vm79, %v335, %v737
    %vm758 = vcmask 523264
    %v759 = vsel %vm758, %v756, %v743
    %v760 = vsel %vm758, %v757, %v745
    %vm761 = vcmask 785408
    %v762 = vsel %vm761, %v759, %v751
    %v763 = vsel %vm761, %v760, %v753
    %v764 = vsub.f32 %v336, %v660
    %v765 = vsub.f32 %v337, %v663
    %v766 = vmul.f32 %v336, %v660
    %v767 = vmul.f32 %v337, %v663
    %770 = vrot.lane.b32.xlu0 %v660, 32
    %v771 = vpop.permute.xlu0 %770
    %772 = vrot.lane.b32.xlu0 %v663, 32
    %v773 = vpop.permute.xlu0 %772
    %778 = vrot.lane.b32.xlu0 %v764, 64
    %v779 = vpop.permute.xlu0 %778
    %780 = vrot.lane.b32.xlu0 %v765, 64
    %v781 = vpop.permute.xlu0 %780
    %786 = vrot.lane.b32.xlu0 %v766, 96
    %v787 = vpop.permute.xlu0 %786
    %788 = vrot.lane.b32.xlu0 %v767, 96
    %v789 = vpop.permute.xlu0 %788
    %v792 = vsel %vm79, %v336, %v771
    %v793 = vsel %vm79, %v337, %v773
    %v794 = vsel %vm758, %v792, %v779
    %v795 = vsel %vm758, %v793, %v781
    %v796 = vsel %vm761, %v794, %v787
    %v797 = vsel %vm761, %v795, %v789
    %v798 = vpack.c.bf16 %v763, %v762
    %v799 = vpack.c.bf16 %v797, %v796
    %v800 = vlaneseq
    %v801 = vshrl.u32 %v800, 7
    %v802 = vsub.s32 0, %v801
    %v803 = vrot.slane %v727, %v802
    %v820 = vunpack.c.l.b16 %v711
    %v821 = vunpack.c.l.b16 %v712
    %v822 = vunpack.c.l.b16 %v713
    %v823 = vunpack.c.l.b16 %v714
    %v824 = vunpack.c.l.b16 %v715
    %v825 = vunpack.c.l.b16 %v716
    %v826 = vunpack.c.l.b16 %v717
    %v827 = vunpack.c.l.b16 %v718
    %v828 = vunpack.c.l.b16 %v719
    %v829 = vunpack.c.l.b16 %v720
    %v830 = vunpack.c.l.b16 %v721
    %v831 = vunpack.c.l.b16 %v722
    %v832 = vunpack.c.l.b16 %v723
    %v833 = vunpack.c.l.b16 %v724
    %v834 = vunpack.c.l.b16 %v725
    %v835 = vunpack.c.l.b16 %v726
    %v836 = vpack.c.b16 %v821, %v820
    %v837 = vpack.c.b16 %v823, %v822
    %v838 = vpack.c.b16 %v825, %v824
    %v839 = vpack.c.b16 %v827, %v826
    %v840 = vpack.c.b16 %v829, %v828
    %v841 = vpack.c.b16 %v831, %v830
    %v842 = vpack.c.b16 %v833, %v832
    %v843 = vpack.c.b16 %v835, %v834
    %852 = vmatprep.subr.bf16.mxu0 0
    %853 = vmatpush1.bf16.msra.mxu0 %v843
    %854 = vmatprep.subr.bf16.mxu0 0
    %855 = vmatpush1.bf16.msra.mxu0 %v842
    %856 = vmatprep.subr.bf16.mxu0 0
    %857 = vmatpush1.bf16.msra.mxu0 %v841
    %858 = vmatprep.subr.bf16.mxu0 0
    %859 = vmatpush1.bf16.msra.mxu0 %v840
    %860 = vmatprep.subr.bf16.mxu0 0
    %861 = vmatpush1.bf16.msra.mxu0 %v839
    %862 = vmatprep.subr.bf16.mxu0 0
    %863 = vmatpush1.bf16.msra.mxu0 %v838
    %864 = vmatprep.subr.bf16.mxu0 0
    %865 = vmatpush1.bf16.msra.mxu0 %v837
    %866 = vmatprep.subr.bf16.mxu0 0
    %867 = vmatpush1.bf16.msra.mxu0 %v836
    %868 = vmatprep.subr.bf16.mxu0 0
    %869 = vmatpush2.bf16.msra.mxu0 0
    %870 = vmatprep.subr.bf16.mxu0 0
    %871 = vmatpush2.bf16.msra.mxu0 0
    %872 = vmatprep.subr.bf16.mxu0 0
    %873 = vmatpush2.bf16.msra.mxu0 0
    %874 = vmatprep.subr.bf16.mxu0 0
    %875 = vmatpush2.bf16.msra.mxu0 0
    %876 = vmatprep.subr.bf16.mxu0 0
    %877 = vmatpush2.bf16.msra.mxu0 0
    %878 = vmatprep.subr.bf16.mxu0 0
    %879 = vmatpush2.bf16.msra.mxu0 0
    %880 = vmatprep.subr.bf16.mxu0 0
    %881 = vmatpush2.bf16.msra.mxu0 0
    %882 = vmatprep.subr.bf16.mxu0 0
    %883 = vmatpush2.bf16.msra.mxu0 0
    %884 = vmatprep.mubr.bf16.mxu0 0
    %885 = vmatmul.mubr.bf16.gmra.mxu0 %v798
    %v886 = vpop.f32.mrf.mxu0
    %v887 = vadd.f32 %v803, %v886
    %v888 = vpop.f32.mrf.mxu0
    %v889 = vpop.f32.mrf.mxu0
    %v890 = vadd.f32 %v803, %v889
    %v891 = vpop.f32.mrf.mxu0
    %892 = vmatprep.mubr.bf16.mxu0 0
    %893 = vmatmul.mubr.bf16.gmra.mxu0 %v799
    %v894 = vpop.f32.mrf.mxu0
    %v895 = vadd.f32 %v803, %v894
    %v896 = vpop.f32.mrf.mxu0
    %v897 = vpop.f32.mrf.mxu0
    %v898 = vadd.f32 %v803, %v897
    %v899 = vpop.f32.mrf.mxu0
    %900 = vdwg.mxu0
    %v901 = vmax.f32 %v887, 0.0
    %v902 = vmax.f32 %v890, 0.0
    %v903 = vmax.f32 %v895, 0.0
    %v904 = vmax.f32 %v898, 0.0
    %v905 = vpack.c.bf16 %v902, %v901
    %v906 = vpack.c.bf16 %v904, %v903
    %v907 = vld [vmem:[%s5 + $0x20] sm:$0xf]
    %v908 = vld [vmem:[%s5 + $0x24] sm:$0xf]
    %v909 = vld [vmem:[%s5 + $0x28] sm:$0xf]
    %v910 = vld [vmem:[%s5 + $0x2c] sm:$0xf]
    %v911 = vld [vmem:[%s6 + $0x2] sm:$0x1]
    %v912 = vld [vmem:[%s5 + $0x30] sm:$0xf]
    %v913 = vld [vmem:[%s5 + $0x34] sm:$0xf]
    %v914 = vld [vmem:[%s5 + $0x38] sm:$0xf]
    %v915 = vld [vmem:[%s5 + $0x3c] sm:$0xf]
    %v916 = vld [vmem:[%s6 + $0x3] sm:$0x1]
    %v921 = vunpack.c.l.b16 %v907
    %v922 = vunpack.c.l.b16 %v908
    %v923 = vunpack.c.l.b16 %v909
    %v924 = vunpack.c.l.b16 %v910
    %v925 = vpack.c.b16 %v922, %v921
    %v926 = vpack.c.b16 %v924, %v923
    %v930 = vsel %vm79, %v905, 0
    %v933 = vsel %vm79, %v906, 0
    %935 = vmatprep.subr.bf16.mxu0 0
    %936 = vmatpush1.bf16.msra.mxu0 0
    %937 = vmatprep.subr.bf16.mxu0 0
    %938 = vmatpush1.bf16.msra.mxu0 0
    %939 = vmatprep.subr.bf16.mxu0 0
    %940 = vmatpush1.bf16.msra.mxu0 0
    %941 = vmatprep.subr.bf16.mxu0 0
    %942 = vmatpush1.bf16.msra.mxu0 0
    %943 = vmatprep.subr.bf16.mxu0 0
    %944 = vmatpush1.bf16.msra.mxu0 0
    %945 = vmatprep.subr.bf16.mxu0 0
    %946 = vmatpush1.bf16.msra.mxu0 0
    %947 = vmatprep.subr.bf16.mxu0 0
    %948 = vmatpush1.bf16.msra.mxu0 %v926
    %949 = vmatprep.subr.bf16.mxu0 0
    %950 = vmatpush1.bf16.msra.mxu0 %v925
    %951 = vmatprep.subr.bf16.mxu0 0
    %952 = vmatpush2.bf16.msra.mxu0 0
    %953 = vmatprep.subr.bf16.mxu0 0
    %954 = vmatpush2.bf16.msra.mxu0 0
    %955 = vmatprep.subr.bf16.mxu0 0
    %956 = vmatpush2.bf16.msra.mxu0 0
    %957 = vmatprep.subr.bf16.mxu0 0
    %958 = vmatpush2.bf16.msra.mxu0 0
    %959 = vmatprep.subr.bf16.mxu0 0
    %960 = vmatpush2.bf16.msra.mxu0 0
    %961 = vmatprep.subr.bf16.mxu0 0
    %962 = vmatpush2.bf16.msra.mxu0 0
    %963 = vmatprep.subr.bf16.mxu0 0
    %964 = vmatpush2.bf16.msra.mxu0 0
    %965 = vmatprep.subr.bf16.mxu0 0
    %966 = vmatpush2.bf16.msra.mxu0 0
    %967 = vmatprep.mubr.bf16.mxu0 0
    %968 = vmatmul.mubr.bf16.gmra.mxu0 %v930
    %v969 = vpop.f32.mrf.mxu0
    %v970 = vadd.f32 0.0, %v969
    %v971 = vpop.f32.mrf.mxu0
    %v972 = vpop.f32.mrf.mxu0
    %v973 = vadd.f32 0.0, %v972
    %v974 = vpop.f32.mrf.mxu0
    %975 = vmatprep.mubr.bf16.mxu0 0
    %976 = vmatmul.mubr.bf16.gmra.mxu0 %v933
    %v977 = vpop.f32.mrf.mxu0
    %v978 = vadd.f32 0.0, %v977
    %v979 = vpop.f32.mrf.mxu0
    %v980 = vpop.f32.mrf.mxu0
    %v981 = vadd.f32 0.0, %v980
    %v982 = vpop.f32.mrf.mxu0
    %983 = vdwg.mxu0
    %v984 = vpack.c.bf16 %v973, %v970
    %v985 = vpack.c.bf16 %v981, %v978
    %v986 = vlaneseq
    %v987 = vshrl.u32 %v986, 7
    %v988 = vsub.s32 0, %v987
    %v989 = vrot.slane %v911, %v988
    %990 = vmatprep.subr.bf16.mxu0 0
    %991 = vmatpush1.bf16.msra.mxu0 0
    %992 = vmatprep.subr.bf16.mxu0 0
    %993 = vmatpush1.bf16.msra.mxu0 0
    %994 = vmatprep.subr.bf16.mxu0 0
    %995 = vmatpush1.bf16.msra.mxu0 0
    %996 = vmatprep.subr.bf16.mxu0 0
    %997 = vmatpush1.bf16.msra.mxu0 0
    %998 = vmatprep.subr.bf16.mxu0 0
    %999 = vmatpush1.bf16.msra.mxu0 0
    %1000 = vmatprep.subr.bf16.mxu0 0
    %1001 = vmatpush1.bf16.msra.mxu0 0
    %1002 = vmatprep.subr.bf16.mxu0 0
    %1003 = vmatpush1.bf16.msra.mxu0 %v985
    %1004 = vmatprep.subr.bf16.mxu0 0
    %1005 = vmatpush1.bf16.msra.mxu0 %v984
    %1006 = vmatprep.subr.bf16.mxu0 0
    %1007 = vmatpush2.bf16.msra.mxu0 0
    %1008 = vmatprep.subr.bf16.mxu0 0
    %1009 = vmatpush2.bf16.msra.mxu0 0
    %1010 = vmatprep.subr.bf16.mxu0 0
    %1011 = vmatpush2.bf16.msra.mxu0 0
    %1012 = vmatprep.subr.bf16.mxu0 0
    %1013 = vmatpush2.bf16.msra.mxu0 0
    %1014 = vmatprep.subr.bf16.mxu0 0
    %1015 = vmatpush2.bf16.msra.mxu0 0
    %1016 = vmatprep.subr.bf16.mxu0 0
    %1017 = vmatpush2.bf16.msra.mxu0 0
    %1018 = vmatprep.subr.bf16.mxu0 0
    %1019 = vmatpush2.bf16.msra.mxu0 0
    %1020 = vmatprep.subr.bf16.mxu0 0
    %1021 = vmatpush2.bf16.msra.mxu0 0
    %1022 = vmatprep.mubr.bf16.mxu0 0
    %1023 = vmatmul.mubr.bf16.gmra.mxu0 %v152
    %v1024 = vpop.f32.mrf.mxu0
    %v1025 = vadd.f32 %v989, %v1024
    %v1026 = vpop.f32.mrf.mxu0
    %v1027 = vpop.f32.mrf.mxu0
    %v1028 = vadd.f32 %v989, %v1027
    %v1029 = vpop.f32.mrf.mxu0
    %1030 = vmatprep.mubr.bf16.mxu0 0
    %1031 = vmatmul.mubr.bf16.gmra.mxu0 %v155
    %v1032 = vpop.f32.mrf.mxu0
    %v1033 = vadd.f32 %v989, %v1032
    %v1034 = vpop.f32.mrf.mxu0
    %v1035 = vpop.f32.mrf.mxu0
    %v1036 = vadd.f32 %v989, %v1035
    %v1037 = vpop.f32.mrf.mxu0
    %1038 = vdwg.mxu0
    %v1039 = vmax.f32 %v1025, 0.0
    %v1040 = vmax.f32 %v1028, 0.0
    %v1041 = vmax.f32 %v1033, 0.0
    %v1042 = vmax.f32 %v1036, 0.0
    %v1043 = vpack.c.bf16 %v1040, %v1039
    %v1044 = vpack.c.bf16 %v1042, %v1041
    %v1049 = vunpack.c.l.b16 %v912
    %v1050 = vunpack.c.l.b16 %v913
    %v1051 = vunpack.c.l.b16 %v914
    %v1052 = vunpack.c.l.b16 %v915
    %v1053 = vpack.c.b16 %v1050, %v1049
    %v1054 = vpack.c.b16 %v1052, %v1051
    %v1058 = vsel %vm79, %v1043, 0
    %v1061 = vsel %vm79, %v1044, 0
    %1063 = vmatprep.subr.bf16.mxu0 0
    %1064 = vmatpush1.bf16.msra.mxu0 0
    %1065 = vmatprep.subr.bf16.mxu0 0
    %1066 = vmatpush1.bf16.msra.mxu0 0
    %1067 = vmatprep.subr.bf16.mxu0 0
    %1068 = vmatpush1.bf16.msra.mxu0 0
    %1069 = vmatprep.subr.bf16.mxu0 0
    %1070 = vmatpush1.bf16.msra.mxu0 0
    %1071 = vmatprep.subr.bf16.mxu0 0
    %1072 = vmatpush1.bf16.msra.mxu0 0
    %1073 = vmatprep.subr.bf16.mxu0 0
    %1074 = vmatpush1.bf16.msra.mxu0 0
    %1075 = vmatprep.subr.bf16.mxu0 0
    %1076 = vmatpush1.bf16.msra.mxu0 %v1054
    %1077 = vmatprep.subr.bf16.mxu0 0
    %1078 = vmatpush1.bf16.msra.mxu0 %v1053
    %1079 = vmatprep.subr.bf16.mxu0 0
    %1080 = vmatpush2.bf16.msra.mxu0 0
    %1081 = vmatprep.subr.bf16.mxu0 0
    %1082 = vmatpush2.bf16.msra.mxu0 0
    %1083 = vmatprep.subr.bf16.mxu0 0
    %1084 = vmatpush2.bf16.msra.mxu0 0
    %1085 = vmatprep.subr.bf16.mxu0 0
    %1086 = vmatpush2.bf16.msra.mxu0 0
    %1087 = vmatprep.subr.bf16.mxu0 0
    %1088 = vmatpush2.bf16.msra.mxu0 0
    %1089 = vmatprep.subr.bf16.mxu0 0
    %1090 = vmatpush2.bf16.msra.mxu0 0
    %1091 = vmatprep.subr.bf16.mxu0 0
    %1092 = vmatpush2.bf16.msra.mxu0 0
    %1093 = vmatprep.subr.bf16.mxu0 0
    %1094 = vmatpush2.bf16.msra.mxu0 0
    %1095 = vmatprep.mubr.bf16.mxu0 0
    %1096 = vmatmul.mubr.bf16.gmra.mxu0 %v1058
    %v1097 = vpop.f32.mrf.mxu0
    %v1098 = vadd.f32 0.0, %v1097
    %v1099 = vpop.f32.mrf.mxu0
    %v1100 = vpop.f32.mrf.mxu0
    %v1101 = vadd.f32 0.0, %v1100
    %v1102 = vpop.f32.mrf.mxu0
    %1103 = vmatprep.mubr.bf16.mxu0 0
    %1104 = vmatmul.mubr.bf16.gmra.mxu0 %v1061
    %v1105 = vpop.f32.mrf.mxu0
    %v1106 = vadd.f32 0.0, %v1105
    %v1107 = vpop.f32.mrf.mxu0
    %v1108 = vpop.f32.mrf.mxu0
    %v1109 = vadd.f32 0.0, %v1108
    %v1110 = vpop.f32.mrf.mxu0
    %1111 = vdwg.mxu0
    %v1112 = vpack.c.bf16 %v1101, %v1098
    %v1113 = vpack.c.bf16 %v1109, %v1106
    %v1114 = vlaneseq
    %v1115 = vshrl.u32 %v1114, 7
    %v1116 = vsub.s32 0, %v1115
    %v1117 = vrot.slane %v916, %v1116
    %1118 = vmatprep.subr.bf16.mxu0 0
    %1119 = vmatpush1.bf16.msra.mxu0 0
    %1120 = vmatprep.subr.bf16.mxu0 0
    %1121 = vmatpush1.bf16.msra.mxu0 0
    %1122 = vmatprep.subr.bf16.mxu0 0
    %1123 = vmatpush1.bf16.msra.mxu0 0
    %1124 = vmatprep.subr.bf16.mxu0 0
    %1125 = vmatpush1.bf16.msra.mxu0 0
    %1126 = vmatprep.subr.bf16.mxu0 0
    %1127 = vmatpush1.bf16.msra.mxu0 0
    %1128 = vmatprep.subr.bf16.mxu0 0
    %1129 = vmatpush1.bf16.msra.mxu0 0
    %1130 = vmatprep.subr.bf16.mxu0 0
    %1131 = vmatpush1.bf16.msra.mxu0 %v1113
    %1132 = vmatprep.subr.bf16.mxu0 0
    %1133 = vmatpush1.bf16.msra.mxu0 %v1112
    %1134 = vmatprep.subr.bf16.mxu0 0
    %1135 = vmatpush2.bf16.msra.mxu0 0
    %1136 = vmatprep.subr.bf16.mxu0 0
    %1137 = vmatpush2.bf16.msra.mxu0 0
    %1138 = vmatprep.subr.bf16.mxu0 0
    %1139 = vmatpush2.bf16.msra.mxu0 0
    %1140 = vmatprep.subr.bf16.mxu0 0
    %1141 = vmatpush2.bf16.msra.mxu0 0
    %1142 = vmatprep.subr.bf16.mxu0 0
    %1143 = vmatpush2.bf16.msra.mxu0 0
    %1144 = vmatprep.subr.bf16.mxu0 0
    %1145 = vmatpush2.bf16.msra.mxu0 0
    %1146 = vmatprep.subr.bf16.mxu0 0
    %1147 = vmatpush2.bf16.msra.mxu0 0
    %1148 = vmatprep.subr.bf16.mxu0 0
    %1149 = vmatpush2.bf16.msra.mxu0 0
    %1150 = vmatprep.mubr.bf16.mxu0 0
    %1151 = vmatmul.mubr.bf16.gmra.mxu0 %v152
    %v1152 = vpop.f32.mrf.mxu0
    %v1153 = vadd.f32 %v1117, %v1152
    %v1154 = vpop.f32.mrf.mxu0
    %v1155 = vpop.f32.mrf.mxu0
    %v1156 = vadd.f32 %v1117, %v1155
    %v1157 = vpop.f32.mrf.mxu0
    %1158 = vmatprep.mubr.bf16.mxu0 0
    %1159 = vmatmul.mubr.bf16.gmra.mxu0 %v155
    %v1160 = vpop.f32.mrf.mxu0
    %v1161 = vadd.f32 %v1117, %v1160
    %v1162 = vpop.f32.mrf.mxu0
    %v1163 = vpop.f32.mrf.mxu0
    %v1164 = vadd.f32 %v1117, %v1163
    %v1165 = vpop.f32.mrf.mxu0
    %1166 = vdwg.mxu0
    %v1167 = vmax.f32 %v1153, 0.0
    %v1168 = vmax.f32 %v1156, 0.0
    %v1169 = vmax.f32 %v1161, 0.0
    %v1170 = vmax.f32 %v1164, 0.0
    %s1171 = sld [smem:[#allocation2]]
    %v1172 = vstv %s1171
    %vm1173 = vcmp.eq.s32.totalorder %v477, %v1172
    %v1174 = vsel %vm1173, 1, 0
    %v1175 = vcvt.s32.f32 %v1174
    %s1176 = sld [smem:[#allocation2 + $0x1]]
    %v1177 = vstv %s1176
    %vm1178 = vcmp.eq.s32.totalorder %v477, %v1177
    %v1179 = vsel %vm1178, 1, 0
    %v1180 = vcvt.s32.f32 %v1179
    %s1181 = sld [smem:[#allocation2 + $0x2]]
    %v1182 = vstv %s1181
    %vm1183 = vcmp.eq.s32.totalorder %v477, %v1182
    %v1184 = vsel %vm1183, 1, 0
    %v1185 = vcvt.s32.f32 %v1184
    %s1186 = sld [smem:[#allocation2 + $0x3]]
    %v1187 = vstv %s1186
    %vm1188 = vcmp.eq.s32.totalorder %v477, %v1187
    %v1189 = vsel %vm1188, 1, 0
    %v1190 = vcvt.s32.f32 %v1189
    %vm1191 = vcmask 1040384
    %v1192 = vsel %vm1191, %v1175, %v1180
    %vm1193 = vcmask 1041408
    %v1194 = vsel %vm1193, %v1192, %v1185
    %vm1195 = vcmask 1042432
    %v1196 = vsel %vm1195, %v1194, %v1190
    %v1198 = vsel %vm79, %v1196, 0
    %1200 = vmatprep.subr.mxu0 0.0
    %1201 = vmatpush1.msra.mxu0 0.0
    %1202 = vmatprep.subr.mxu0 0.0
    %1203 = vmatpush1.msra.mxu0 0.0
    %1204 = vmatprep.subr.mxu0 0.0
    %1205 = vmatpush1.msra.mxu0 0.0
    %1206 = vmatprep.subr.mxu0 0.0
    %1207 = vmatpush1.msra.mxu0 0.0
    %1208 = vmatprep.subr.mxu0 0.0
    %1209 = vmatpush1.msra.mxu0 0.0
    %1210 = vmatprep.subr.mxu0 0.0
    %1211 = vmatpush1.msra.mxu0 0.0
    %1212 = vmatprep.subr.mxu0 0.0
    %1213 = vmatpush1.msra.mxu0 0.0
    %1214 = vmatprep.subr.mxu0 0.0
    %1215 = vmatpush1.msra.mxu0 0.0
    %1216 = vmatprep.subr.mxu0 0.0
    %1217 = vmatpush1.msra.mxu0 0.0
    %1218 = vmatprep.subr.mxu0 0.0
    %1219 = vmatpush1.msra.mxu0 0.0
    %1220 = vmatprep.subr.mxu0 0.0
    %1221 = vmatpush1.msra.mxu0 0.0
    %1222 = vmatprep.subr.mxu0 0.0
    %1223 = vmatpush1.msra.mxu0 0.0
    %1224 = vmatprep.subr.mxu0 0.0
    %1225 = vmatpush1.msra.mxu0 %v1170
    %1226 = vmatprep.subr.mxu0 0.0
    %1227 = vmatpush1.msra.mxu0 %v1169
    %1228 = vmatprep.subr.mxu0 0.0
    %1229 = vmatpush1.msra.mxu0 %v1168
    %1230 = vmatprep.subr.mxu0 0.0
    %1231 = vmatpush1.msra.mxu0 %v1167
    %1232 = vmatprep.subr.mxu0 0.0
    %1233 = vmatpush2.msra.mxu0 0.0
    %1234 = vmatprep.subr.mxu0 0.0
    %1235 = vmatpush2.msra.mxu0 0.0
    %1236 = vmatprep.subr.mxu0 0.0
    %1237 = vmatpush2.msra.mxu0 0.0
    %1238 = vmatprep.subr.mxu0 0.0
    %1239 = vmatpush2.msra.mxu0 0.0
    %1240 = vmatprep.subr.mxu0 0.0
    %1241 = vmatpush2.msra.mxu0 0.0
    %1242 = vmatprep.subr.mxu0 0.0
    %1243 = vmatpush2.msra.mxu0 0.0
    %1244 = vmatprep.subr.mxu0 0.0
    %1245 = vmatpush2.msra.mxu0 0.0
    %1246 = vmatprep.subr.mxu0 0.0
    %1247 = vmatpush2.msra.mxu0 0.0
    %1248 = vmatprep.subr.mxu0 0.0
    %1249 = vmatpush2.msra.mxu0 0.0
    %1250 = vmatprep.subr.mxu0 0.0
    %1251 = vmatpush2.msra.mxu0 0.0
    %1252 = vmatprep.subr.mxu0 0.0
    %1253 = vmatpush2.msra.mxu0 0.0
    %1254 = vmatprep.subr.mxu0 0.0
    %1255 = vmatpush2.msra.mxu0 0.0
    %1256 = vmatprep.subr.mxu0 0.0
    %1257 = vmatpush2.msra.mxu0 0.0
    %1258 = vmatprep.subr.mxu0 0.0
    %1259 = vmatpush2.msra.mxu0 0.0
    %1260 = vmatprep.subr.mxu0 0.0
    %1261 = vmatpush2.msra.mxu0 0.0
    %1262 = vmatprep.subr.mxu0 0.0
    %1263 = vmatpush2.msra.mxu0 0.0
    %1264 = vmatprep.mubr.f32.mxu0 0.0
    %1265 = vmatmul.mubr.f32.gmra.mxu0 %v1198
    %v1266 = vpop.f32.mrf.mxu0
    %v1267 = vadd.f32 0.0, %v1266
    %v1268 = vpop.f32.mrf.mxu0
    %1269 = vdwg.mxu0
    %v1270 = vld [vmem:[%s2] sm:$0x3]
    %1272 = vrot.lane.b32.xlu0 %v1267, 32
    %v1273 = vpop.permute.xlu0 %1272
    %v1275 = vrot.slane %v1267, 2
    %1276 = vrot.lane.b32.xlu0 %v1275, 64
    %v1277 = vpop.permute.xlu0 %1276
    %v1279 = vsel %vm79, %v1270, %v1273
    %v1280 = vsel %vm758, %v1279, %v1277
    %vm1281 = vcmask 779264
    %v1282 = vsel %vm1281, %v1280, 0.0
    %1283 = vadd.xlane.f32.xlu0 %v1282
    %v1284 = vpop.xlane.xlu0 %1283
    %v1285 = vrcp.pop 96.0
    %v1286 = vmul.f32 %v1284, %v1285
    %v1287 = vsub.f32 %v1280, %v1286
    %v1288 = vmul.f32 %v1287, %v1287
    %v1289 = vsel %vm1281, %v1288, 0.0
    %1290 = vadd.xlane.f32.xlu0 %v1289
    %v1291 = vpop.xlane.xlu0 %1290
    %v1292 = vmul.f32 %v1291, %v1285
    %v1293 = vadd.f32 %v1292, 1e-05
    %v1294 = vrsqrt.pop %v1293
    %v1295 = vmul.f32 %v1287, %v1294
    %v1296 = vld [vmem:[%s7] sm:$0x1]
    %v1297 = vlaneseq
    %v1298 = vshrl.u32 %v1297, 7
    %v1299 = vsub.s32 0, %v1298
    %v1300 = vrot.slane %v1296, %v1299
    %v1301 = vmul.f32 %v1295, %v1300
    %v1302 = vld [vmem:[%s7 + $0x1] sm:$0x1]
    %v1303 = vlaneseq
    %v1304 = vshrl.u32 %v1303, 7
    %v1305 = vsub.s32 0, %v1304
    %v1306 = vrot.slane %v1302, %v1305
    %v1307 = vadd.f32 %v1301, %v1306
    %v1308 = vld [vmem:[%s8] sm:$0xff]
    %v1309 = vld [vmem:[%s8 + $0x8] sm:$0xff]
    %v1310 = vld [vmem:[%s8 + $0x10] sm:$0xff]
    %v1311 = vld [vmem:[%s8 + $0x18] sm:$0xff]
    %v1312 = vld [vmem:[%s8 + $0x20] sm:$0xff]
    %v1313 = vld [vmem:[%s8 + $0x28] sm:$0xff]
    %v1314 = vld [vmem:[%s8 + $0x30] sm:$0xff]
    %v1315 = vld [vmem:[%s8 + $0x38] sm:$0xff]
    %v1316 = vld [vmem:[%s8 + $0x40] sm:$0xff]
    %v1317 = vld [vmem:[%s8 + $0x48] sm:$0xff]
    %v1318 = vld [vmem:[%s8 + $0x50] sm:$0xff]
    %v1319 = vld [vmem:[%s8 + $0x58] sm:$0xff]
    %v1320 = vld [vmem:[%s8 + $0x60] sm:$0x1]
    %v1321 = vlaneseq
    %v1322 = vshrl.u32 %v1321, 7
    %v1323 = vsub.s32 0, %v1322
    %v1324 = vrot.slane %v1320, %v1323
    %v1326 = vsel %vm761, %v1307, 0
    %1328 = vmatprep.subr.mxu0 0.0
    %1329 = vmatpush1.msra.mxu0 0.0
    %1330 = vmatprep.subr.mxu0 0.0
    %1331 = vmatpush1.msra.mxu0 0.0
    %1332 = vmatprep.subr.mxu0 0.0
    %1333 = vmatpush1.msra.mxu0 0.0
    %1334 = vmatprep.subr.mxu0 0.0
    %1335 = vmatpush1.msra.mxu0 0.0
    %1336 = vmatprep.subr.mxu0 0.0
    %1337 = vmatpush1.msra.mxu0 %v1319
    %1338 = vmatprep.subr.mxu0 0.0
    %1339 = vmatpush1.msra.mxu0 %v1318
    %1340 = vmatprep.subr.mxu0 0.0
    %1341 = vmatpush1.msra.mxu0 %v1317
    %1342 = vmatprep.subr.mxu0 0.0
    %1343 = vmatpush1.msra.mxu0 %v1316
    %1344 = vmatprep.subr.mxu0 0.0
    %1345 = vmatpush1.msra.mxu0 %v1315
    %1346 = vmatprep.subr.mxu0 0.0
    %1347 = vmatpush1.msra.mxu0 %v1314
    %1348 = vmatprep.subr.mxu0 0.0
    %1349 = vmatpush1.msra.mxu0 %v1313
    %1350 = vmatprep.subr.mxu0 0.0
    %1351 = vmatpush1.msra.mxu0 %v1312
    %1352 = vmatprep.subr.mxu0 0.0
    %1353 = vmatpush1.msra.mxu0 %v1311
    %1354 = vmatprep.subr.mxu0 0.0
    %1355 = vmatpush1.msra.mxu0 %v1310
    %1356 = vmatprep.subr.mxu0 0.0
    %1357 = vmatpush1.msra.mxu0 %v1309
    %1358 = vmatprep.subr.mxu0 0.0
    %1359 = vmatpush1.msra.mxu0 %v1308
    %1360 = vmatprep.subr.mxu0 0.0
    %1361 = vmatpush2.msra.mxu0 0.0
    %1362 = vmatprep.subr.mxu0 0.0
    %1363 = vmatpush2.msra.mxu0 0.0
    %1364 = vmatprep.subr.mxu0 0.0
    %1365 = vmatpush2.msra.mxu0 0.0
    %1366 = vmatprep.subr.mxu0 0.0
    %1367 = vmatpush2.msra.mxu0 0.0
    %1368 = vmatprep.subr.mxu0 0.0
    %1369 = vmatpush2.msra.mxu0 0.0
    %1370 = vmatprep.subr.mxu0 0.0
    %1371 = vmatpush2.msra.mxu0 0.0
    %1372 = vmatprep.subr.mxu0 0.0
    %1373 = vmatpush2.msra.mxu0 0.0
    %1374 = vmatprep.subr.mxu0 0.0
    %1375 = vmatpush2.msra.mxu0 0.0
    %1376 = vmatprep.subr.mxu0 0.0
    %1377 = vmatpush2.msra.mxu0 0.0
    %1378 = vmatprep.subr.mxu0 0.0
    %1379 = vmatpush2.msra.mxu0 0.0
    %1380 = vmatprep.subr.mxu0 0.0
    %1381 = vmatpush2.msra.mxu0 0.0
    %1382 = vmatprep.subr.mxu0 0.0
    %1383 = vmatpush2.msra.mxu0 0.0
    %1384 = vmatprep.subr.mxu0 0.0
    %1385 = vmatpush2.msra.mxu0 0.0
    %1386 = vmatprep.subr.mxu0 0.0
    %1387 = vmatpush2.msra.mxu0 0.0
    %1388 = vmatprep.subr.mxu0 0.0
    %1389 = vmatpush2.msra.mxu0 0.0
    %1390 = vmatprep.subr.mxu0 0.0
    %1391 = vmatpush2.msra.mxu0 0.0
    %1392 = vmatprep.mubr.f32.mxu0 0.0
    %1393 = vmatmul.mubr.f32.gmra.mxu0 %v1326
    %v1394 = vpop.f32.mrf.mxu0
    %v1395 = vadd.f32 %v1324, %v1394
    %v1396 = vpop.f32.mrf.mxu0
    %1397 = vdwg.mxu0
    %vm1398 = vcmask 25600
    %1399 = vst.msk [vmem:[#allocation5] sm:$0x3] %vm1398, %v1395
    // Predicated region
    $region42: #{word_level_net_forward.1} parent=1 // pred_check
      _
    $region43: #{word_level_net_forward.1} parent=1 // pred_check_branch
      %1401 = sbr.rel (0) target = $region45
    $region44: #{word_level_net_forward.1} parent=1 // pred_region
      %s1403 = ssub.s32 32, 32
      %1404 = vsyncadd [#allocation3], %s1403
      %s1406 = sshll.u32 [#allocation5], 4
      %s1407 = int_to_ptr.vmem [resolvable:$true] %s1406
      %1409 = dma.vmem_to_hbm [thread:$0]  %s1407, 32, %s9, [#allocation3]
    $region45: #{word_level_net_forward.1} parent=1 // pred_fallthru
      _
    // Predicated region
    $region46: #{word_level_net_forward.1} parent=1 // pred_check
      _
    $region47: #{word_level_net_forward.1} parent=1 // pred_check_branch
      %1411 = sbr.rel (0) target = $region49
    $region48: #{word_level_net_forward.1} parent=1 // pred_region
      %1412 = dma.done [#allocation3], 32
    $region49: #{word_level_net_forward.1} parent=1 // pred_fallthru
      _
    %1413 = vsyncpa [#allocation3], 1
    %1414 = vsyncpa [#allocation4], 1

</llo_original>
